<compile_context>
chip_gen: v6e
topology: v6e:2x2x1
jax: 0.10.0
libtpu: 0.0.40
codegen_flags: <defaults>
</compile_context>

<pallas_src>
from functools import partial

import jax
import jax.numpy as jnp
from jax.experimental import pallas as pl
from jax.experimental.pallas import tpu as pltpu

D = 128            # dmodel
HEADS = 8
DK = D // HEADS
EPS = 1e-6
NUM_CLASSES = 5
CLS_PAD = 128      # lane-dense classifier width (only first NUM_CLASSES columns are real)
NUM_VOCABS = 100
T_STEP = 5
VMEM_LIMIT = 64 * 1024 * 1024


def _round8(n):
    return ((n + 7) // 8) * 8


def _row_tiling(n, max_tile=512):
    # Biggest row tile that fits comfortably; split into >=2 blocks when possible so the
    # 'parallel' grid axis can shard across v7x's two TensorCores.
    npad = _round8(n)
    if npad <= max_tile:
        if npad >= 16:
            tn = npad // 2
            if tn % 8:
                tn = _round8(tn)
                npad = 2 * tn
        else:
            tn = npad
    else:
        tn = max_tile
        npad = ((n + tn - 1) // tn) * tn
    return tn, npad


def _layer_norm(x, gamma, beta, d):
    # Annotated-transformer LayerNorm: a2*(x-mean)/(std+eps)+b2, torch.std -> unbiased (d-1).
    mean = jnp.mean(x, axis=-1, keepdims=True)
    var = jnp.sum((x - mean) ** 2, axis=-1, keepdims=True) / (d - 1)
    std = jnp.sqrt(var)
    return gamma * (x - mean) / (std + EPS) + beta


# ----------------------------------------------------------------------------------
# Kernel 1: per-node multi-head attention over the 5-token context [c0, c1, h, e, s].
#   ctx_ref is the pre-stacked (5, TN, D) slab; ONE fused K|V matmul and ONE
#   block-diagonal head-mask matmul produce all per-head scores (bf16, f32 accumulate).
# ----------------------------------------------------------------------------------
def node_attn_kernel(ctx_ref, wq_ref, bq_ref, wkv_ref, bkv_ref, wo_ref, bo_ref,
                     hmask_ref, gamma_ref, beta_ref, out_ref):
    ctx = ctx_ref[...]                                            # (5, TN, D) f32
    tn = ctx.shape[1]
    h = ctx[2]                                                    # slab 2 is h

    q = jnp.dot(h.astype(jnp.bfloat16), wq_ref[...],
                preferred_element_type=jnp.float32) + bq_ref[...]           # (TN, D)

    ctx_flat = ctx.reshape(5 * tn, D)                                        # free (tn % 8 == 0)
    kv = jnp.dot(ctx_flat.astype(jnp.bfloat16), wkv_ref[...],
                 preferred_element_type=jnp.float32) + bkv_ref[...]          # (5*TN, 2D)
    k5 = kv[:, :D].reshape(5, tn, D)
    v5 = kv[:, D:].reshape(5, tn, D)

    scale = 1.0 / (DK ** 0.5)
    # per-head score reduce+broadcast over each head's DK lanes: one (5*TN, D)x(D, D) matmul
    qk = (k5 * q[None, :, :]).reshape(5 * tn, D)                             # f32 reshape (free)
    scores = jnp.dot(qk.astype(jnp.bfloat16), hmask_ref[...],
                     preferred_element_type=jnp.float32).reshape(5, tn, D) * scale

    m = jnp.max(scores, axis=0)                                              # (TN, D)
    ex = jnp.exp(scores - m[None])
    denom = jnp.sum(ex, axis=0)
    inv = pl.reciprocal(denom, approx=True)

    attn = jnp.sum(ex * v5, axis=0) * inv                                    # (TN, D)

    out = jnp.dot(attn.astype(jnp.bfloat16), wo_ref[...],
                  preferred_element_type=jnp.float32) + bo_ref[...]
    out = jnp.maximum(out, 0.0)                                              # relu
    out_ref[...] = _layer_norm(out, gamma_ref[...], beta_ref[...], D)


# ----------------------------------------------------------------------------------
# Kernel 2: per-tree global attention, batched over trees:
#           S (TB, D) attends over cat(H_pad, S, lane-pad) (TB, L, D).
#   Positions >= self_pos are masked (the appended S itself + any L padding).
# ----------------------------------------------------------------------------------
def global_attn_kernel(s_ref, ctx_ref, wq_ref, bq_ref, wkv_ref, bkv_ref,
                       wo_ref, bo_ref, hmask_ref, gamma_ref, beta_ref, out_ref,
                       *, self_pos):
    tb, l, _ = ctx_ref.shape
    s = s_ref[...]                                                           # (TB, D)

    q = jnp.dot(s.astype(jnp.bfloat16), wq_ref[...],
                preferred_element_type=jnp.float32) + bq_ref[...]            # (TB, D)

    ctx_flat = ctx_ref[...].reshape(tb * l, D)                               # free (l % 8 == 0)
    kv = jnp.dot(ctx_flat.astype(jnp.bfloat16), wkv_ref[...],
                 preferred_element_type=jnp.float32) + bkv_ref[...]          # (TB*L, 2D)
    k = kv[:, :D].reshape(tb, l, D)
    v = kv[:, D:].reshape(tb, l, D)

    scale = 1.0 / (DK ** 0.5)
    qk = (k * q[:, None, :]).reshape(tb * l, D)                              # f32 reshape (free)
    scores = jnp.dot(qk.astype(jnp.bfloat16), hmask_ref[...],
                     preferred_element_type=jnp.float32).reshape(tb, l, D) * scale

    # TODO(synk): Transformer_Utils source unavailable; `self_mask=True` is interpreted as
    # masking the query's own (appended, last real) key position.  pos >= self_pos also
    # masks the lane-padding slots beyond max_nodes+1.
    pos = jax.lax.broadcasted_iota(jnp.int32, (1, l, 1), 1)
    scores = jnp.where(pos >= self_pos, jnp.float32(-1e9), scores)

    m = jnp.max(scores, axis=1, keepdims=True)                               # (TB, 1, D)
    ex = jnp.exp(scores - m)
    denom = jnp.sum(ex, axis=1, keepdims=True)
    attn = ex * pl.reciprocal(denom, approx=True)                            # (TB, L, D)

    out = jnp.sum(attn * v, axis=1)                                          # (TB, D)
    out = jnp.dot(out.astype(jnp.bfloat16), wo_ref[...],
                  preferred_element_type=jnp.float32) + bo_ref[...]
    out = jnp.maximum(out, 0.0)
    out_ref[...] = _layer_norm(out, gamma_ref[...], beta_ref[...], D)


# ----------------------------------------------------------------------------------
# Kernel 3: final classifier linear (lane-dense 128-wide output, sliced in wrapper)
# ----------------------------------------------------------------------------------
def linear_kernel(h_ref, w_ref, b_ref, out_ref):
    out_ref[...] = jnp.dot(h_ref[...].astype(jnp.bfloat16), w_ref[...],
                           preferred_element_type=jnp.float32) + b_ref[...]


# ----------------------------------------------------------------------------------
# Wrappers
# ----------------------------------------------------------------------------------
def node_attention(ctx5, p, tn):
    npad = ctx5.shape[1]
    ctx_spec = pl.BlockSpec((5, tn, D), lambda i: (0, i, 0))
    node_spec = pl.BlockSpec((tn, D), lambda i: (i, 0))
    wdd = pl.BlockSpec((D, D), lambda i: (0, 0))
    wkv = pl.BlockSpec((D, 2 * D), lambda i: (0, 0))
    bd = pl.BlockSpec((1, D), lambda i: (0, 0))
    bkv = pl.BlockSpec((1, 2 * D), lambda i: (0, 0))
    return pl.pallas_call(
        node_attn_kernel,
        out_shape=jax.ShapeDtypeStruct((npad, D), jnp.float32),
        grid=(npad // tn,),
        in_specs=[ctx_spec, wdd, bd, wkv, bkv, wdd, bd, wdd, bd, bd],
        out_specs=node_spec,
        compiler_params=pltpu.CompilerParams(
            dimension_semantics=("parallel",), vmem_limit_bytes=VMEM_LIMIT),
    )(ctx5, p["wq1"], p["bq1"], p["wkv1"], p["bkv1"],
      p["wo1"], p["bo1"], p["hmask"], p["g1"], p["b1"])


def global_attention(s_tree, ctx, p, self_pos):
    b, l, _ = ctx.shape
    tb = min(64, _round8(b))
    b_pad = ((b + tb - 1) // tb) * tb
    if b_pad != b:
        s_tree = jnp.pad(s_tree, ((0, b_pad - b), (0, 0)))
        ctx = jnp.pad(ctx, ((0, b_pad - b), (0, 0), (0, 0)))

    kern = partial(global_attn_kernel, self_pos=self_pos)
    s_spec = pl.BlockSpec((tb, D), lambda i: (i, 0))
    ctx_spec = pl.BlockSpec((tb, l, D), lambda i: (i, 0, 0))
    wdd = pl.BlockSpec((D, D), lambda i: (0, 0))
    wkv = pl.BlockSpec((D, 2 * D), lambda i: (0, 0))
    bd = pl.BlockSpec((1, D), lambda i: (0, 0))
    bkv = pl.BlockSpec((1, 2 * D), lambda i: (0, 0))
    out = pl.pallas_call(
        kern,
        out_shape=jax.ShapeDtypeStruct((b_pad, D), jnp.float32),
        grid=(b_pad // tb,),
        in_specs=[s_spec, ctx_spec, wdd, bd, wkv, bkv, wdd, bd, wdd, bd, bd],
        out_specs=s_spec,
        compiler_params=pltpu.CompilerParams(
            dimension_semantics=("parallel",), vmem_limit_bytes=VMEM_LIMIT),
    )(s_tree, ctx, p["wq2"], p["bq2"], p["wkv2"], p["bkv2"],
      p["wo2"], p["bo2"], p["hmask"], p["g2"], p["b2"])
    return out[:b]


def final_linear(h, p, tn):
    npad = h.shape[0]
    return pl.pallas_call(
        linear_kernel,
        out_shape=jax.ShapeDtypeStruct((npad, CLS_PAD), jnp.float32),
        grid=(npad // tn,),
        in_specs=[pl.BlockSpec((tn, D), lambda i: (i, 0)),
                  pl.BlockSpec((D, CLS_PAD), lambda i: (0, 0)),
                  pl.BlockSpec((1, CLS_PAD), lambda i: (0, 0))],
        out_specs=pl.BlockSpec((tn, CLS_PAD), lambda i: (i, 0)),
        compiler_params=pltpu.CompilerParams(dimension_semantics=("parallel",)),
    )(h, p["w_cls_pad"], p["b_cls_pad"])


def graph_transformer_forward(p, wordid, mask, valid, child0, child1, is_leaf,
                              num_trees, max_nodes, t_step=T_STEP):
    # Node arrays arrive in padded per-tree layout: NP = num_trees * max_nodes rows.
    npnodes = num_trees * max_nodes
    tn, npad = _row_tiling(npnodes)
    pad1 = lambda x, fill=0: jnp.pad(x, (0, npad - npnodes), constant_values=fill)

    wordid_p = pad1(wordid)
    mask_p = pad1(mask)
    maskf = mask_p.astype(jnp.float32)[:, None]
    leaff = pad1(is_leaf, 1).astype(jnp.float32)[:, None]
    validf = pad1(valid).astype(jnp.float32)[:, None]
    ci0 = jnp.maximum(pad1(child0, -1), 0)
    ci1 = jnp.maximum(pad1(child1, -1), 0)
    tree_id_p = jnp.minimum(jnp.arange(npad, dtype=jnp.int32) // max_nodes,
                            num_trees - 1)

    e = jnp.take(p["emb"], wordid_p * mask_p, axis=0) * maskf                # (npad, D)
    h = e

    # InitS: per-tree mean of e over that tree's nodes
    sum_e = e[:npnodes].reshape(num_trees, max_nodes, D).sum(axis=1)
    cnt = valid.astype(jnp.float32).reshape(num_trees, max_nodes).sum(axis=1)
    s_tree = sum_e / cnt[:, None]                                            # (B, D)

    l_real = max_nodes + 1
    l_pad = _round8(l_real)
    ctx_lane_pad = jnp.zeros((num_trees, l_pad - l_real, D), jnp.float32)

    for _ in range(t_step):
        # TODO(synk): dgl.prop_nodes_topo with the given message/reduce funcs only copies
        # children h into 'c'; implemented as JAX gathers (graph glue), not in-kernel.
        s_nodes = s_tree[tree_id_p]                                          # (npad, D)
        c0 = (1.0 - leaff) * h[ci0]
        c1 = (1.0 - leaff) * h[ci1]
        ctx5 = jnp.stack([c0, c1, h, e, s_nodes], axis=0)                    # (5, npad, D)
        h = node_attention(ctx5, p, tn)                                      # apply_node_func

        # extractH: padded slots zeroed (reference zero-pads); extractS: current per-tree s
        h_pad3 = (h * validf)[:npnodes].reshape(num_trees, max_nodes, D)
        parts = [h_pad3, s_tree[:, None, :]]
        if l_pad > l_real:
            parts.append(ctx_lane_pad)
        ctx_g = jnp.concatenate(parts, axis=1)                               # (B, l_pad, D)
        s_tree = global_attention(s_tree, ctx_g, p, self_pos=max_nodes)      # updateGlobalVec

    # nn.Dropout(0.2) -> identity in eval/inference
    logits = final_linear(h, p, tn)
    return logits[:npnodes, :NUM_CLASSES]


def init_params(key):
    ks = jax.random.split(key, 12)
    wf = lambda k, shape, scale=0.05: jax.random.normal(k, shape, jnp.float32) * scale
    bf = lambda x: x.astype(jnp.bfloat16)
    p = {}
    p["emb"] = wf(ks[0], (NUM_VOCABS, D), 0.1)
    wq1, wk1, wv1, wo1 = (wf(ks[i], (D, D)) for i in (1, 2, 3, 4))
    wq2, wk2, wv2, wo2 = (wf(ks[i], (D, D)) for i in (5, 6, 7, 8))
    # weights stored bf16 (MXU operands); biases / LayerNorm params stay f32
    p["wq1"], p["wo1"] = bf(wq1), bf(wo1)
    p["wq2"], p["wo2"] = bf(wq2), bf(wo2)
    p["wkv1"] = bf(jnp.concatenate([wk1, wv1], axis=1))          # fused K|V (D, 2D)
    p["wkv2"] = bf(jnp.concatenate([wk2, wv2], axis=1))
    for n in ("q1", "o1", "q2", "o2"):
        p["b" + n] = jnp.zeros((1, D), jnp.float32)
    p["bkv1"] = jnp.zeros((1, 2 * D), jnp.float32)
    p["bkv2"] = jnp.zeros((1, 2 * D), jnp.float32)
    p["g1"] = jnp.ones((1, D), jnp.float32)
    p["b1"] = jnp.zeros((1, D), jnp.float32)
    p["g2"] = jnp.ones((1, D), jnp.float32)
    p["b2"] = jnp.zeros((1, D), jnp.float32)
    w_cls = wf(ks[9], (D, NUM_CLASSES))
    p["w_cls_pad"] = bf(jnp.zeros((D, CLS_PAD), jnp.float32).at[:, :NUM_CLASSES].set(w_cls))
    p["b_cls_pad"] = jnp.zeros((1, CLS_PAD), jnp.float32)
    # block-diagonal head mask (bf16): (q*k) @ hmask == per-head score broadcast over DK lanes
    head_id = jnp.arange(D) // DK
    p["hmask"] = (head_id[:, None] == head_id[None, :]).astype(jnp.bfloat16)   # (D, D)
    return p


if __name__ == "__main__":
    import numpy as np

    key = jax.random.PRNGKey(0)
    pkey, dkey = jax.random.split(key)
    params = init_params(pkey)

    B, MAX_NODES = 2, 7
    NP = B * MAX_NODES

    # Padded per-tree layout.  Tree 0: full binary tree with 7 nodes (rows 0..6).
    # Tree 1: 5 nodes (rows 7..11), rows 12..13 are padding slots.
    child0 = np.full((NP,), -1, np.int32)
    child1 = np.full((NP,), -1, np.int32)
    is_leaf = np.ones((NP,), np.int32)
    valid = np.zeros((NP,), np.int32)

    for parent, (c0, c1) in {0: (1, 2), 1: (3, 4), 2: (5, 6)}.items():   # tree 0
        child0[parent], child1[parent], is_leaf[parent] = c0, c1, 0
    valid[0:7] = 1
    for parent, (c0, c1) in {7: (8, 9), 8: (10, 11)}.items():            # tree 1
        child0[parent], child1[parent], is_leaf[parent] = c0, c1, 0
    valid[7:12] = 1

    wordid = np.asarray(
        jax.random.randint(dkey, (NP,), 0, NUM_VOCABS, dtype=jnp.int32))
    mask = (is_leaf * valid).astype(np.int32)   # SST convention: only (real) leaves carry words

    fwd = jax.jit(graph_transformer_forward, static_argnums=(7, 8, 9))
    logits = fwd(params, jnp.asarray(wordid), jnp.asarray(mask), jnp.asarray(valid),
                 jnp.asarray(child0), jnp.asarray(child1), jnp.asarray(is_leaf),
                 B, MAX_NODES, T_STEP)
    logits = jax.block_until_ready(logits)

    assert logits.shape == (NP, NUM_CLASSES)
    logits_np = np.asarray(logits)
    assert np.all(np.isfinite(logits_np[valid == 1]))
    print("KERNEL_OK")
</pallas_src>

<mosaic_0001>
module attributes {stable_mosaic.version = 11 : i64} {
  func.func @node_attn_kernel(%arg0: i32, %arg1: memref<5x8x128xf32, #tpu.memory_space<vmem>>, %arg2: memref<128x128xbf16, #tpu.memory_space<vmem>>, %arg3: memref<1x128xf32, #tpu.memory_space<vmem>>, %arg4: memref<128x256xbf16, #tpu.memory_space<vmem>>, %arg5: memref<1x256xf32, #tpu.memory_space<vmem>>, %arg6: memref<128x128xbf16, #tpu.memory_space<vmem>>, %arg7: memref<1x128xf32, #tpu.memory_space<vmem>>, %arg8: memref<128x128xbf16, #tpu.memory_space<vmem>>, %arg9: memref<1x128xf32, #tpu.memory_space<vmem>>, %arg10: memref<1x128xf32, #tpu.memory_space<vmem>>, %arg11: memref<8x128xf32, #tpu.memory_space<vmem>>) attributes {dimension_semantics = [#tpu.dimension_semantics<parallel>], iteration_bounds = array<i64: 2>, scalar_prefetch = 0 : i64, scratch_operands = 0 : i64, tpu.core_type = #tpu.core_type<tc>, window_params = [{transform_indices = @transform_0, window_bounds = array<i64: 5, 8, 128>}, {pipeline_mode = #tpu.pipeline_mode<synchronous>, transform_indices = @transform_1, window_bounds = array<i64: 128, 128>}, {pipeline_mode = #tpu.pipeline_mode<synchronous>, transform_indices = @transform_2, window_bounds = array<i64: 1, 128>}, {pipeline_mode = #tpu.pipeline_mode<synchronous>, transform_indices = @transform_3, window_bounds = array<i64: 128, 256>}, {pipeline_mode = #tpu.pipeline_mode<synchronous>, transform_indices = @transform_4, window_bounds = array<i64: 1, 256>}, {pipeline_mode = #tpu.pipeline_mode<synchronous>, transform_indices = @transform_5, window_bounds = array<i64: 128, 128>}, {pipeline_mode = #tpu.pipeline_mode<synchronous>, transform_indices = @transform_6, window_bounds = array<i64: 1, 128>}, {pipeline_mode = #tpu.pipeline_mode<synchronous>, transform_indices = @transform_7, window_bounds = array<i64: 128, 128>}, {pipeline_mode = #tpu.pipeline_mode<synchronous>, transform_indices = @transform_8, window_bounds = array<i64: 1, 128>}, {pipeline_mode = #tpu.pipeline_mode<synchronous>, transform_indices = @transform_9, window_bounds = array<i64: 1, 128>}, {transform_indices = @transform_10, window_bounds = array<i64: 8, 128>}]} {
    %c0 = arith.constant 0 : index
    %c0_0 = arith.constant 0 : index
    %c0_1 = arith.constant 0 : index
    %0 = vector.load %arg1[%c0, %c0_0, %c0_1] : memref<5x8x128xf32, #tpu.memory_space<vmem>>, vector<5x8x128xf32>
    %1 = vector.extract_strided_slice %0 {offsets = [2, 0, 0], sizes = [1, 8, 128], strides = [1, 1, 1]} : vector<5x8x128xf32> to vector<1x8x128xf32>
    %2 = vector.shape_cast %1 : vector<1x8x128xf32> to vector<8x128xf32>
    %3 = arith.truncf %2 : vector<8x128xf32> to vector<8x128xbf16>
    %c0_2 = arith.constant 0 : index
    %c0_3 = arith.constant 0 : index
    %4 = vector.load %arg2[%c0_2, %c0_3] : memref<128x128xbf16, #tpu.memory_space<vmem>>, vector<128x128xbf16>
    %cst = arith.constant dense<0.000000e+00> : vector<8x128xf32>
    %5 = tpu.matmul %3, %4, %cst {dimension_numbers = #tpu.dot_dimension_numbers<[1], [0], [0], [1], [0, 0, 1, 1], [], []>} : vector<8x128xbf16>, vector<128x128xbf16>, vector<8x128xf32> -> vector<8x128xf32>
    %c0_4 = arith.constant 0 : index
    %c0_5 = arith.constant 0 : index
    %6 = vector.load %arg3[%c0_4, %c0_5] : memref<1x128xf32, #tpu.memory_space<vmem>>, vector<1x128xf32>
    %7 = vector.broadcast %6 : vector<1x128xf32> to vector<8x128xf32>
    %8 = arith.addf %5, %7 : vector<8x128xf32>
    %9 = vector.shape_cast %0 : vector<5x8x128xf32> to vector<40x128xf32>
    %10 = arith.truncf %9 : vector<40x128xf32> to vector<40x128xbf16>
    %c0_6 = arith.constant 0 : index
    %c0_7 = arith.constant 0 : index
    %11 = vector.load %arg4[%c0_6, %c0_7] : memref<128x256xbf16, #tpu.memory_space<vmem>>, vector<128x256xbf16>
    %cst_8 = arith.constant dense<0.000000e+00> : vector<40x256xf32>
    %12 = tpu.matmul %10, %11, %cst_8 {dimension_numbers = #tpu.dot_dimension_numbers<[1], [0], [0], [1], [0, 0, 1, 1], [], []>} : vector<40x128xbf16>, vector<128x256xbf16>, vector<40x256xf32> -> vector<40x256xf32>
    %c0_9 = arith.constant 0 : index
    %c0_10 = arith.constant 0 : index
    %13 = vector.load %arg5[%c0_9, %c0_10] : memref<1x256xf32, #tpu.memory_space<vmem>>, vector<1x256xf32>
    %14 = vector.broadcast %13 : vector<1x256xf32> to vector<40x256xf32>
    %15 = arith.addf %12, %14 : vector<40x256xf32>
    %16 = vector.extract_strided_slice %15 {offsets = [0, 0], sizes = [40, 128], strides = [1, 1]} : vector<40x256xf32> to vector<40x128xf32>
    %17 = vector.shape_cast %16 : vector<40x128xf32> to vector<5x8x128xf32>
    %18 = vector.extract_strided_slice %15 {offsets = [0, 128], sizes = [40, 128], strides = [1, 1]} : vector<40x256xf32> to vector<40x128xf32>
    %19 = vector.shape_cast %18 : vector<40x128xf32> to vector<5x8x128xf32>
    %20 = vector.shape_cast %8 : vector<8x128xf32> to vector<1x8x128xf32>
    %21 = vector.broadcast %20 : vector<1x8x128xf32> to vector<5x8x128xf32>
    %22 = arith.mulf %17, %21 : vector<5x8x128xf32>
    %23 = vector.shape_cast %22 : vector<5x8x128xf32> to vector<40x128xf32>
    %24 = arith.truncf %23 : vector<40x128xf32> to vector<40x128xbf16>
    %c0_11 = arith.constant 0 : index
    %c0_12 = arith.constant 0 : index
    %25 = vector.load %arg8[%c0_11, %c0_12] : memref<128x128xbf16, #tpu.memory_space<vmem>>, vector<128x128xbf16>
    %cst_13 = arith.constant dense<0.000000e+00> : vector<40x128xf32>
    %26 = tpu.matmul %24, %25, %cst_13 {dimension_numbers = #tpu.dot_dimension_numbers<[1], [0], [0], [1], [0, 0, 1, 1], [], []>} : vector<40x128xbf16>, vector<128x128xbf16>, vector<40x128xf32> -> vector<40x128xf32>
    %27 = vector.shape_cast %26 : vector<40x128xf32> to vector<5x8x128xf32>
    %cst_14 = arith.constant 2.500000e-01 : f32
    %28 = vector.broadcast %cst_14 : f32 to vector<5x8x128xf32>
    %29 = arith.mulf %27, %28 : vector<5x8x128xf32>
    %cst_15 = arith.constant dense<0xFF800000> : vector<8x128xf32>
    %30 = vector.multi_reduction <maximumf>, %29, %cst_15 [0] : vector<5x8x128xf32> to vector<8x128xf32>
    %31 = vector.shape_cast %30 : vector<8x128xf32> to vector<1x8x128xf32>
    %32 = vector.broadcast %31 : vector<1x8x128xf32> to vector<5x8x128xf32>
    %33 = arith.subf %29, %32 : vector<5x8x128xf32>
    %34 = math.exp %33 : vector<5x8x128xf32>
    %cst_16 = arith.constant dense<0.000000e+00> : vector<8x128xf32>
    %35 = vector.multi_reduction <add>, %34, %cst_16 [0] : vector<5x8x128xf32> to vector<8x128xf32>
    %36 = tpu.reciprocal %35 {approx = true} : vector<8x128xf32> -> vector<8x128xf32>
    %37 = arith.mulf %34, %19 : vector<5x8x128xf32>
    %cst_17 = arith.constant dense<0.000000e+00> : vector<8x128xf32>
    %38 = vector.multi_reduction <add>, %37, %cst_17 [0] : vector<5x8x128xf32> to vector<8x128xf32>
    %39 = arith.mulf %38, %36 : vector<8x128xf32>
    %40 = arith.truncf %39 : vector<8x128xf32> to vector<8x128xbf16>
    %c0_18 = arith.constant 0 : index
    %c0_19 = arith.constant 0 : index
    %41 = vector.load %arg6[%c0_18, %c0_19] : memref<128x128xbf16, #tpu.memory_space<vmem>>, vector<128x128xbf16>
    %cst_20 = arith.constant dense<0.000000e+00> : vector<8x128xf32>
    %42 = tpu.matmul %40, %41, %cst_20 {dimension_numbers = #tpu.dot_dimension_numbers<[1], [0], [0], [1], [0, 0, 1, 1], [], []>} : vector<8x128xbf16>, vector<128x128xbf16>, vector<8x128xf32> -> vector<8x128xf32>
    %c0_21 = arith.constant 0 : index
    %c0_22 = arith.constant 0 : index
    %43 = vector.load %arg7[%c0_21, %c0_22] : memref<1x128xf32, #tpu.memory_space<vmem>>, vector<1x128xf32>
    %44 = vector.broadcast %43 : vector<1x128xf32> to vector<8x128xf32>
    %45 = arith.addf %42, %44 : vector<8x128xf32>
    %cst_23 = arith.constant 0.000000e+00 : f32
    %46 = vector.broadcast %cst_23 : f32 to vector<8x128xf32>
    %47 = arith.maximumf %45, %46 : vector<8x128xf32>
    %c0_24 = arith.constant 0 : index
    %c0_25 = arith.constant 0 : index
    %48 = vector.load %arg9[%c0_24, %c0_25] : memref<1x128xf32, #tpu.memory_space<vmem>>, vector<1x128xf32>
    %c0_26 = arith.constant 0 : index
    %c0_27 = arith.constant 0 : index
    %49 = vector.load %arg10[%c0_26, %c0_27] : memref<1x128xf32, #tpu.memory_space<vmem>>, vector<1x128xf32>
    %cst_28 = arith.constant dense<0.000000e+00> : vector<8xf32>
    %50 = vector.multi_reduction <add>, %47, %cst_28 [1] : vector<8x128xf32> to vector<8xf32>
    %51 = vector.shape_cast %50 : vector<8xf32> to vector<8x1xf32>
    %cst_29 = arith.constant 1.280000e+02 : f32
    %52 = vector.broadcast %cst_29 : f32 to vector<8x1xf32>
    %53 = arith.divf %51, %52 : vector<8x1xf32>
    %54 = vector.broadcast %53 : vector<8x1xf32> to vector<8x128xf32>
    %55 = arith.subf %47, %54 : vector<8x128xf32>
    %56 = arith.mulf %55, %55 : vector<8x128xf32>
    %cst_30 = arith.constant dense<0.000000e+00> : vector<8xf32>
    %57 = vector.multi_reduction <add>, %56, %cst_30 [1] : vector<8x128xf32> to vector<8xf32>
    %58 = vector.shape_cast %57 : vector<8xf32> to vector<8x1xf32>
    %cst_31 = arith.constant 1.270000e+02 : f32
    %59 = vector.broadcast %cst_31 : f32 to vector<8x1xf32>
    %60 = arith.divf %58, %59 : vector<8x1xf32>
    %61 = math.sqrt %60 : vector<8x1xf32>
    %62 = vector.broadcast %53 : vector<8x1xf32> to vector<8x128xf32>
    %63 = arith.subf %47, %62 : vector<8x128xf32>
    %64 = vector.broadcast %48 : vector<1x128xf32> to vector<8x128xf32>
    %65 = arith.mulf %64, %63 : vector<8x128xf32>
    %cst_32 = arith.constant 9.99999997E-7 : f32
    %66 = vector.broadcast %cst_32 : f32 to vector<8x1xf32>
    %67 = arith.addf %61, %66 : vector<8x1xf32>
    %68 = vector.broadcast %67 : vector<8x1xf32> to vector<8x128xf32>
    %69 = arith.divf %65, %68 : vector<8x128xf32>
    %70 = vector.broadcast %49 : vector<1x128xf32> to vector<8x128xf32>
    %71 = arith.addf %69, %70 : vector<8x128xf32>
    %c0_33 = arith.constant 0 : index
    %c0_34 = arith.constant 0 : index
    %72 = vector.load %arg11[%c0_33, %c0_34] : memref<8x128xf32, #tpu.memory_space<vmem>>, vector<8x128xf32>
    tpu.vector_store %arg11[%c0_33, %c0_34], %71 {strides = array<i32>} : memref<8x128xf32, #tpu.memory_space<vmem>>, vector<8x128xf32>,
    return
  }
  func.func @transform_0(%arg0: i32) -> (i32, i32, i32) {
    %c0_i32 = arith.constant 0 : i32
    %c0_i32_0 = arith.constant 0 : i32
    %c0_i32_1 = arith.constant 0 : i32
    return %c0_i32, %arg0, %c0_i32_0 : i32, i32, i32
  }
  func.func @transform_1(%arg0: i32) -> (i32, i32) {
    %c0_i32 = arith.constant 0 : i32
    %c0_i32_0 = arith.constant 0 : i32
    %c0_i32_1 = arith.constant 0 : i32
    return %c0_i32, %c0_i32_0 : i32, i32
  }
  func.func @transform_2(%arg0: i32) -> (i32, i32) {
    %c0_i32 = arith.constant 0 : i32
    %c0_i32_0 = arith.constant 0 : i32
    %c0_i32_1 = arith.constant 0 : i32
    return %c0_i32, %c0_i32_0 : i32, i32
  }
  func.func @transform_3(%arg0: i32) -> (i32, i32) {
    %c0_i32 = arith.constant 0 : i32
    %c0_i32_0 = arith.constant 0 : i32
    %c0_i32_1 = arith.constant 0 : i32
    return %c0_i32, %c0_i32_0 : i32, i32
  }
  func.func @transform_4(%arg0: i32) -> (i32, i32) {
    %c0_i32 = arith.constant 0 : i32
    %c0_i32_0 = arith.constant 0 : i32
    %c0_i32_1 = arith.constant 0 : i32
    return %c0_i32, %c0_i32_0 : i32, i32
  }
  func.func @transform_5(%arg0: i32) -> (i32, i32) {
    %c0_i32 = arith.constant 0 : i32
    %c0_i32_0 = arith.constant 0 : i32
    %c0_i32_1 = arith.constant 0 : i32
    return %c0_i32, %c0_i32_0 : i32, i32
  }
  func.func @transform_6(%arg0: i32) -> (i32, i32) {
    %c0_i32 = arith.constant 0 : i32
    %c0_i32_0 = arith.constant 0 : i32
    %c0_i32_1 = arith.constant 0 : i32
    return %c0_i32, %c0_i32_0 : i32, i32
  }
  func.func @transform_7(%arg0: i32) -> (i32, i32) {
    %c0_i32 = arith.constant 0 : i32
    %c0_i32_0 = arith.constant 0 : i32
    %c0_i32_1 = arith.constant 0 : i32
    return %c0_i32, %c0_i32_0 : i32, i32
  }
  func.func @transform_8(%arg0: i32) -> (i32, i32) {
    %c0_i32 = arith.constant 0 : i32
    %c0_i32_0 = arith.constant 0 : i32
    %c0_i32_1 = arith.constant 0 : i32
    return %c0_i32, %c0_i32_0 : i32, i32
  }
  func.func @transform_9(%arg0: i32) -> (i32, i32) {
    %c0_i32 = arith.constant 0 : i32
    %c0_i32_0 = arith.constant 0 : i32
    %c0_i32_1 = arith.constant 0 : i32
    return %c0_i32, %c0_i32_0 : i32, i32
  }
  func.func @transform_10(%arg0: i32) -> (i32, i32) {
    %c0_i32 = arith.constant 0 : i32
    %c0_i32_0 = arith.constant 0 : i32
    return %arg0, %c0_i32 : i32, i32
  }
}

module attributes {stable_mosaic.version = 11 : i64} {
  func.func @global_attn_kernel(%arg0: i32, %arg1: memref<8x128xf32, #tpu.memory_space<vmem>>, %arg2: memref<8x8x128xf32, #tpu.memory_space<vmem>>, %arg3: memref<128x128xbf16, #tpu.memory_space<vmem>>, %arg4: memref<1x128xf32, #tpu.memory_space<vmem>>, %arg5: memref<128x256xbf16, #tpu.memory_space<vmem>>, %arg6: memref<1x256xf32, #tpu.memory_space<vmem>>, %arg7: memref<128x128xbf16, #tpu.memory_space<vmem>>, %arg8: memref<1x128xf32, #tpu.memory_space<vmem>>, %arg9: memref<128x128xbf16, #tpu.memory_space<vmem>>, %arg10: memref<1x128xf32, #tpu.memory_space<vmem>>, %arg11: memref<1x128xf32, #tpu.memory_space<vmem>>, %arg12: memref<8x128xf32, #tpu.memory_space<vmem>>) attributes {dimension_semantics = [#tpu.dimension_semantics<parallel>], iteration_bounds = array<i64: 1>, scalar_prefetch = 0 : i64, scratch_operands = 0 : i64, tpu.core_type = #tpu.core_type<tc>, window_params = [{transform_indices = @transform_0, window_bounds = array<i64: 8, 128>}, {transform_indices = @transform_1, window_bounds = array<i64: 8, 8, 128>}, {pipeline_mode = #tpu.pipeline_mode<synchronous>, transform_indices = @transform_2, window_bounds = array<i64: 128, 128>}, {pipeline_mode = #tpu.pipeline_mode<synchronous>, transform_indices = @transform_3, window_bounds = array<i64: 1, 128>}, {pipeline_mode = #tpu.pipeline_mode<synchronous>, transform_indices = @transform_4, window_bounds = array<i64: 128, 256>}, {pipeline_mode = #tpu.pipeline_mode<synchronous>, transform_indices = @transform_5, window_bounds = array<i64: 1, 256>}, {pipeline_mode = #tpu.pipeline_mode<synchronous>, transform_indices = @transform_6, window_bounds = array<i64: 128, 128>}, {pipeline_mode = #tpu.pipeline_mode<synchronous>, transform_indices = @transform_7, window_bounds = array<i64: 1, 128>}, {pipeline_mode = #tpu.pipeline_mode<synchronous>, transform_indices = @transform_8, window_bounds = array<i64: 128, 128>}, {pipeline_mode = #tpu.pipeline_mode<synchronous>, transform_indices = @transform_9, window_bounds = array<i64: 1, 128>}, {pipeline_mode = #tpu.pipeline_mode<synchronous>, transform_indices = @transform_10, window_bounds = array<i64: 1, 128>}, {transform_indices = @transform_11, window_bounds = array<i64: 8, 128>}]} {
    %c0 = arith.constant 0 : index
    %c0_0 = arith.constant 0 : index
    %0 = vector.load %arg1[%c0, %c0_0] : memref<8x128xf32, #tpu.memory_space<vmem>>, vector<8x128xf32>
    %1 = arith.truncf %0 : vector<8x128xf32> to vector<8x128xbf16>
    %c0_1 = arith.constant 0 : index
    %c0_2 = arith.constant 0 : index
    %2 = vector.load %arg3[%c0_1, %c0_2] : memref<128x128xbf16, #tpu.memory_space<vmem>>, vector<128x128xbf16>
    %cst = arith.constant dense<0.000000e+00> : vector<8x128xf32>
    %3 = tpu.matmul %1, %2, %cst {dimension_numbers = #tpu.dot_dimension_numbers<[1], [0], [0], [1], [0, 0, 1, 1], [], []>} : vector<8x128xbf16>, vector<128x128xbf16>, vector<8x128xf32> -> vector<8x128xf32>
    %c0_3 = arith.constant 0 : index
    %c0_4 = arith.constant 0 : index
    %4 = vector.load %arg4[%c0_3, %c0_4] : memref<1x128xf32, #tpu.memory_space<vmem>>, vector<1x128xf32>
    %5 = vector.broadcast %4 : vector<1x128xf32> to vector<8x128xf32>
    %6 = arith.addf %3, %5 : vector<8x128xf32>
    %c0_5 = arith.constant 0 : index
    %c0_6 = arith.constant 0 : index
    %c0_7 = arith.constant 0 : index
    %7 = vector.load %arg2[%c0_5, %c0_6, %c0_7] : memref<8x8x128xf32, #tpu.memory_space<vmem>>, vector<8x8x128xf32>
    %8 = vector.shape_cast %7 : vector<8x8x128xf32> to vector<64x128xf32>
    %9 = arith.truncf %8 : vector<64x128xf32> to vector<64x128xbf16>
    %c0_8 = arith.constant 0 : index
    %c0_9 = arith.constant 0 : index
    %10 = vector.load %arg5[%c0_8, %c0_9] : memref<128x256xbf16, #tpu.memory_space<vmem>>, vector<128x256xbf16>
    %cst_10 = arith.constant dense<0.000000e+00> : vector<64x256xf32>
    %11 = tpu.matmul %9, %10, %cst_10 {dimension_numbers = #tpu.dot_dimension_numbers<[1], [0], [0], [1], [0, 0, 1, 1], [], []>} : vector<64x128xbf16>, vector<128x256xbf16>, vector<64x256xf32> -> vector<64x256xf32>
    %c0_11 = arith.constant 0 : index
    %c0_12 = arith.constant 0 : index
    %12 = vector.load %arg6[%c0_11, %c0_12] : memref<1x256xf32, #tpu.memory_space<vmem>>, vector<1x256xf32>
    %13 = vector.broadcast %12 : vector<1x256xf32> to vector<64x256xf32>
    %14 = arith.addf %11, %13 : vector<64x256xf32>
    %15 = vector.extract_strided_slice %14 {offsets = [0, 0], sizes = [64, 128], strides = [1, 1]} : vector<64x256xf32> to vector<64x128xf32>
    %16 = vector.shape_cast %15 : vector<64x128xf32> to vector<8x8x128xf32>
    %17 = vector.extract_strided_slice %14 {offsets = [0, 128], sizes = [64, 128], strides = [1, 1]} : vector<64x256xf32> to vector<64x128xf32>
    %18 = vector.shape_cast %17 : vector<64x128xf32> to vector<8x8x128xf32>
    %19 = vector.shape_cast %6 : vector<8x128xf32> to vector<8x1x128xf32>
    %20 = vector.broadcast %19 : vector<8x1x128xf32> to vector<8x8x128xf32>
    %21 = arith.mulf %16, %20 : vector<8x8x128xf32>
    %22 = vector.shape_cast %21 : vector<8x8x128xf32> to vector<64x128xf32>
    %23 = arith.truncf %22 : vector<64x128xf32> to vector<64x128xbf16>
    %c0_13 = arith.constant 0 : index
    %c0_14 = arith.constant 0 : index
    %24 = vector.load %arg9[%c0_13, %c0_14] : memref<128x128xbf16, #tpu.memory_space<vmem>>, vector<128x128xbf16>
    %cst_15 = arith.constant dense<0.000000e+00> : vector<64x128xf32>
    %25 = tpu.matmul %23, %24, %cst_15 {dimension_numbers = #tpu.dot_dimension_numbers<[1], [0], [0], [1], [0, 0, 1, 1], [], []>} : vector<64x128xbf16>, vector<128x128xbf16>, vector<64x128xf32> -> vector<64x128xf32>
    %26 = vector.shape_cast %25 : vector<64x128xf32> to vector<8x8x128xf32>
    %cst_16 = arith.constant 2.500000e-01 : f32
    %27 = vector.broadcast %cst_16 : f32 to vector<8x8x128xf32>
    %28 = arith.mulf %26, %27 : vector<8x8x128xf32>
    %29 = tpu.iota {dimensions = array<i32: 1>} : vector<1x8x1xi32>
    %c7_i32 = arith.constant 7 : i32
    %30 = vector.broadcast %c7_i32 : i32 to vector<1x8x1xi32>
    %31 = arith.cmpi sge, %29, %30 : vector<1x8x1xi32>
    %cst_17 = arith.constant -1.000000e+09 : f32
    %32 = vector.shape_cast %31 : vector<1x8x1xi1> to vector<1x8x1xi1>
    %33 = vector.broadcast %32 : vector<1x8x1xi1> to vector<8x8x128xi1>
    %34 = vector.broadcast %cst_17 : f32 to vector<8x8x128xf32>
    %35 = arith.select %33, %34, %28 : vector<8x8x128xi1>, vector<8x8x128xf32>
    %cst_18 = arith.constant dense<0xFF800000> : vector<8x128xf32>
    %36 = vector.multi_reduction <maximumf>, %35, %cst_18 [1] : vector<8x8x128xf32> to vector<8x128xf32>
    %37 = vector.shape_cast %36 : vector<8x128xf32> to vector<8x1x128xf32>
    %38 = vector.broadcast %37 : vector<8x1x128xf32> to vector<8x8x128xf32>
    %39 = arith.subf %35, %38 : vector<8x8x128xf32>
    %40 = math.exp %39 : vector<8x8x128xf32>
    %cst_19 = arith.constant dense<0.000000e+00> : vector<8x128xf32>
    %41 = vector.multi_reduction <add>, %40, %cst_19 [1] : vector<8x8x128xf32> to vector<8x128xf32>
    %42 = vector.shape_cast %41 : vector<8x128xf32> to vector<8x1x128xf32>
    %43 = tpu.reciprocal %42 {approx = true} : vector<8x1x128xf32> -> vector<8x1x128xf32>
    %44 = vector.broadcast %43 : vector<8x1x128xf32> to vector<8x8x128xf32>
    %45 = arith.mulf %40, %44 : vector<8x8x128xf32>
    %46 = arith.mulf %45, %18 : vector<8x8x128xf32>
    %cst_20 = arith.constant dense<0.000000e+00> : vector<8x128xf32>
    %47 = vector.multi_reduction <add>, %46, %cst_20 [1] : vector<8x8x128xf32> to vector<8x128xf32>
    %48 = arith.truncf %47 : vector<8x128xf32> to vector<8x128xbf16>
    %c0_21 = arith.constant 0 : index
    %c0_22 = arith.constant 0 : index
    %49 = vector.load %arg7[%c0_21, %c0_22] : memref<128x128xbf16, #tpu.memory_space<vmem>>, vector<128x128xbf16>
    %cst_23 = arith.constant dense<0.000000e+00> : vector<8x128xf32>
    %50 = tpu.matmul %48, %49, %cst_23 {dimension_numbers = #tpu.dot_dimension_numbers<[1], [0], [0], [1], [0, 0, 1, 1], [], []>} : vector<8x128xbf16>, vector<128x128xbf16>, vector<8x128xf32> -> vector<8x128xf32>
    %c0_24 = arith.constant 0 : index
    %c0_25 = arith.constant 0 : index
    %51 = vector.load %arg8[%c0_24, %c0_25] : memref<1x128xf32, #tpu.memory_space<vmem>>, vector<1x128xf32>
    %52 = vector.broadcast %51 : vector<1x128xf32> to vector<8x128xf32>
    %53 = arith.addf %50, %52 : vector<8x128xf32>
    %cst_26 = arith.constant 0.000000e+00 : f32
    %54 = vector.broadcast %cst_26 : f32 to vector<8x128xf32>
    %55 = arith.maximumf %53, %54 : vector<8x128xf32>
    %c0_27 = arith.constant 0 : index
    %c0_28 = arith.constant 0 : index
    %56 = vector.load %arg10[%c0_27, %c0_28] : memref<1x128xf32, #tpu.memory_space<vmem>>, vector<1x128xf32>
    %c0_29 = arith.constant 0 : index
    %c0_30 = arith.constant 0 : index
    %57 = vector.load %arg11[%c0_29, %c0_30] : memref<1x128xf32, #tpu.memory_space<vmem>>, vector<1x128xf32>
    %cst_31 = arith.constant dense<0.000000e+00> : vector<8xf32>
    %58 = vector.multi_reduction <add>, %55, %cst_31 [1] : vector<8x128xf32> to vector<8xf32>
    %59 = vector.shape_cast %58 : vector<8xf32> to vector<8x1xf32>
    %cst_32 = arith.constant 1.280000e+02 : f32
    %60 = vector.broadcast %cst_32 : f32 to vector<8x1xf32>
    %61 = arith.divf %59, %60 : vector<8x1xf32>
    %62 = vector.broadcast %61 : vector<8x1xf32> to vector<8x128xf32>
    %63 = arith.subf %55, %62 : vector<8x128xf32>
    %64 = arith.mulf %63, %63 : vector<8x128xf32>
    %cst_33 = arith.constant dense<0.000000e+00> : vector<8xf32>
    %65 = vector.multi_reduction <add>, %64, %cst_33 [1] : vector<8x128xf32> to vector<8xf32>
    %66 = vector.shape_cast %65 : vector<8xf32> to vector<8x1xf32>
    %cst_34 = arith.constant 1.270000e+02 : f32
    %67 = vector.broadcast %cst_34 : f32 to vector<8x1xf32>
    %68 = arith.divf %66, %67 : vector<8x1xf32>
    %69 = math.sqrt %68 : vector<8x1xf32>
    %70 = vector.broadcast %61 : vector<8x1xf32> to vector<8x128xf32>
    %71 = arith.subf %55, %70 : vector<8x128xf32>
    %72 = vector.broadcast %56 : vector<1x128xf32> to vector<8x128xf32>
    %73 = arith.mulf %72, %71 : vector<8x128xf32>
    %cst_35 = arith.constant 9.99999997E-7 : f32
    %74 = vector.broadcast %cst_35 : f32 to vector<8x1xf32>
    %75 = arith.addf %69, %74 : vector<8x1xf32>
    %76 = vector.broadcast %75 : vector<8x1xf32> to vector<8x128xf32>
    %77 = arith.divf %73, %76 : vector<8x128xf32>
    %78 = vector.broadcast %57 : vector<1x128xf32> to vector<8x128xf32>
    %79 = arith.addf %77, %78 : vector<8x128xf32>
    %c0_36 = arith.constant 0 : index
    %c0_37 = arith.constant 0 : index
    %80 = vector.load %arg12[%c0_36, %c0_37] : memref<8x128xf32, #tpu.memory_space<vmem>>, vector<8x128xf32>
    tpu.vector_store %arg12[%c0_36, %c0_37], %79 {strides = array<i32>} : memref<8x128xf32, #tpu.memory_space<vmem>>, vector<8x128xf32>,
    return
  }
  func.func @transform_0(%arg0: i32) -> (i32, i32) {
    %c0_i32 = arith.constant 0 : i32
    %c0_i32_0 = arith.constant 0 : i32
    return %arg0, %c0_i32 : i32, i32
  }
  func.func @transform_1(%arg0: i32) -> (i32, i32, i32) {
    %c0_i32 = arith.constant 0 : i32
    %c0_i32_0 = arith.constant 0 : i32
    %c0_i32_1 = arith.constant 0 : i32
    return %arg0, %c0_i32, %c0_i32_0 : i32, i32, i32
  }
  func.func @transform_2(%arg0: i32) -> (i32, i32) {
    %c0_i32 = arith.constant 0 : i32
    %c0_i32_0 = arith.constant 0 : i32
    %c0_i32_1 = arith.constant 0 : i32
    return %c0_i32, %c0_i32_0 : i32, i32
  }
  func.func @transform_3(%arg0: i32) -> (i32, i32) {
    %c0_i32 = arith.constant 0 : i32
    %c0_i32_0 = arith.constant 0 : i32
    %c0_i32_1 = arith.constant 0 : i32
    return %c0_i32, %c0_i32_0 : i32, i32
  }
  func.func @transform_4(%arg0: i32) -> (i32, i32) {
    %c0_i32 = arith.constant 0 : i32
    %c0_i32_0 = arith.constant 0 : i32
    %c0_i32_1 = arith.constant 0 : i32
    return %c0_i32, %c0_i32_0 : i32, i32
  }
  func.func @transform_5(%arg0: i32) -> (i32, i32) {
    %c0_i32 = arith.constant 0 : i32
    %c0_i32_0 = arith.constant 0 : i32
    %c0_i32_1 = arith.constant 0 : i32
    return %c0_i32, %c0_i32_0 : i32, i32
  }
  func.func @transform_6(%arg0: i32) -> (i32, i32) {
    %c0_i32 = arith.constant 0 : i32
    %c0_i32_0 = arith.constant 0 : i32
    %c0_i32_1 = arith.constant 0 : i32
    return %c0_i32, %c0_i32_0 : i32, i32
  }
  func.func @transform_7(%arg0: i32) -> (i32, i32) {
    %c0_i32 = arith.constant 0 : i32
    %c0_i32_0 = arith.constant 0 : i32
    %c0_i32_1 = arith.constant 0 : i32
    return %c0_i32, %c0_i32_0 : i32, i32
  }
  func.func @transform_8(%arg0: i32) -> (i32, i32) {
    %c0_i32 = arith.constant 0 : i32
    %c0_i32_0 = arith.constant 0 : i32
    %c0_i32_1 = arith.constant 0 : i32
    return %c0_i32, %c0_i32_0 : i32, i32
  }
  func.func @transform_9(%arg0: i32) -> (i32, i32) {
    %c0_i32 = arith.constant 0 : i32
    %c0_i32_0 = arith.constant 0 : i32
    %c0_i32_1 = arith.constant 0 : i32
    return %c0_i32, %c0_i32_0 : i32, i32
  }
  func.func @transform_10(%arg0: i32) -> (i32, i32) {
    %c0_i32 = arith.constant 0 : i32
    %c0_i32_0 = arith.constant 0 : i32
    %c0_i32_1 = arith.constant 0 : i32
    return %c0_i32, %c0_i32_0 : i32, i32
  }
  func.func @transform_11(%arg0: i32) -> (i32, i32) {
    %c0_i32 = arith.constant 0 : i32
    %c0_i32_0 = arith.constant 0 : i32
    return %arg0, %c0_i32 : i32, i32
  }
}

module attributes {stable_mosaic.version = 11 : i64} {
  func.func @linear_kernel(%arg0: i32, %arg1: memref<8x128xf32, #tpu.memory_space<vmem>>, %arg2: memref<128x128xbf16, #tpu.memory_space<vmem>>, %arg3: memref<1x128xf32, #tpu.memory_space<vmem>>, %arg4: memref<8x128xf32, #tpu.memory_space<vmem>>) attributes {dimension_semantics = [#tpu.dimension_semantics<parallel>], iteration_bounds = array<i64: 2>, scalar_prefetch = 0 : i64, scratch_operands = 0 : i64, tpu.core_type = #tpu.core_type<tc>, window_params = [{transform_indices = @transform_0, window_bounds = array<i64: 8, 128>}, {pipeline_mode = #tpu.pipeline_mode<synchronous>, transform_indices = @transform_1, window_bounds = array<i64: 128, 128>}, {pipeline_mode = #tpu.pipeline_mode<synchronous>, transform_indices = @transform_2, window_bounds = array<i64: 1, 128>}, {transform_indices = @transform_3, window_bounds = array<i64: 8, 128>}]} {
    %c0 = arith.constant 0 : index
    %c0_0 = arith.constant 0 : index
    %0 = vector.load %arg1[%c0, %c0_0] : memref<8x128xf32, #tpu.memory_space<vmem>>, vector<8x128xf32>
    %1 = arith.truncf %0 : vector<8x128xf32> to vector<8x128xbf16>
    %c0_1 = arith.constant 0 : index
    %c0_2 = arith.constant 0 : index
    %2 = vector.load %arg2[%c0_1, %c0_2] : memref<128x128xbf16, #tpu.memory_space<vmem>>, vector<128x128xbf16>
    %cst = arith.constant dense<0.000000e+00> : vector<8x128xf32>
    %3 = tpu.matmul %1, %2, %cst {dimension_numbers = #tpu.dot_dimension_numbers<[1], [0], [0], [1], [0, 0, 1, 1], [], []>} : vector<8x128xbf16>, vector<128x128xbf16>, vector<8x128xf32> -> vector<8x128xf32>
    %c0_3 = arith.constant 0 : index
    %c0_4 = arith.constant 0 : index
    %4 = vector.load %arg3[%c0_3, %c0_4] : memref<1x128xf32, #tpu.memory_space<vmem>>, vector<1x128xf32>
    %5 = vector.broadcast %4 : vector<1x128xf32> to vector<8x128xf32>
    %6 = arith.addf %3, %5 : vector<8x128xf32>
    %c0_5 = arith.constant 0 : index
    %c0_6 = arith.constant 0 : index
    %7 = vector.load %arg4[%c0_5, %c0_6] : memref<8x128xf32, #tpu.memory_space<vmem>>, vector<8x128xf32>
    tpu.vector_store %arg4[%c0_5, %c0_6], %6 {strides = array<i32>} : memref<8x128xf32, #tpu.memory_space<vmem>>, vector<8x128xf32>,
    return
  }
  func.func @transform_0(%arg0: i32) -> (i32, i32) {
    %c0_i32 = arith.constant 0 : i32
    %c0_i32_0 = arith.constant 0 : i32
    return %arg0, %c0_i32 : i32, i32
  }
  func.func @transform_1(%arg0: i32) -> (i32, i32) {
    %c0_i32 = arith.constant 0 : i32
    %c0_i32_0 = arith.constant 0 : i32
    %c0_i32_1 = arith.constant 0 : i32
    return %c0_i32, %c0_i32_0 : i32, i32
  }
  func.func @transform_2(%arg0: i32) -> (i32, i32) {
    %c0_i32 = arith.constant 0 : i32
    %c0_i32_0 = arith.constant 0 : i32
    %c0_i32_1 = arith.constant 0 : i32
    return %c0_i32, %c0_i32_0 : i32, i32
  }
  func.func @transform_3(%arg0: i32) -> (i32, i32) {
    %c0_i32 = arith.constant 0 : i32
    %c0_i32_0 = arith.constant 0 : i32
    return %arg0, %c0_i32 : i32, i32
  }
}

</mosaic_0001>

<llo_original>
// kernel: graph_transformer_forward.19
$region0: #{graph_transformer_forward.19}
  #allocation0 [shape = 'u32[]', space=smem, size = 0x4, offset = 0x4, fixed_abs, tag = 'smem constant byte address 0x4 - core index']
  #allocation1 [shape = 'u32[144,128]{1,0:T(1,128)}', space=vmem, size = 0x12000, scoped, tag = 'internal scratch']
  %s0 = inlined_call_operand.vmem [shape: f32[16,128], index: 0, kind: input, shape index: {}]
  %s1 = inlined_call_operand.vmem [shape: bf16[128,128], index: 1, kind: input, shape index: {}]
  %s2 = inlined_call_operand.vmem [shape: f32[1,128], index: 2, kind: input, shape index: {}]
  %s3 = inlined_call_operand.vmem [shape: f32[16,128], index: 3, kind: output, shape index: {}]
  %s4 = sld [smem:[#allocation0]]
  $region45: #{graph_transformer_forward.19} parent=0
    _
  %s6 = ssub.s32 1, %s4
  %s7 = scalar_select 0, %s6, %s4
  loop: start=0, step=1, limit=4
  $region2: #{graph_transformer_forward.19} parent=0 // loop_pre_header
    _
  $region3: #{graph_transformer_forward.19} parent=0 // loop_header
    %s9 = sphi 0, %s13
    %p10 = scmp.ge.s32.totalorder %s9, 4
    %s19 = sphi 0, %s21
    %s22 = sphi 0, %s19
    %s23 = sphi 0, %s22
    %s39 = sphi 0, %s23
    %s43 = sphi 0, %s43
    %s45 = sphi 0, %s43
    %s46 = sphi 0, %s45
    %s60 = sphi 0, %s46
    %s64 = sphi 0, %s64
    %s66 = sphi 0, %s64
    %s67 = sphi 0, %s66
    %s81 = sphi 0, %s67
    %s87 = sphi 0, %s89
    %s90 = sphi 0, %s87
    %s91 = sphi 0, %s90
    %s107 = sphi 0, %s91
  $region4: #{graph_transformer_forward.19} parent=0 // loop_header_branch
    %12 = sbr.rel (%p10) target = $region8
  $region5: #{graph_transformer_forward.19} parent=0 // loop_body
    %s14 = ssub.s32 %s9, 1
    %s15 = ssub.s32 %s9, 2
    %s16 = sadd.s32 %s9, 1
    %s17 = ssub.s32 %s9, %s16
    %p18 = scmp.eq.s32.totalorder %s17, 0
    %s20 = sadd.s32 %s19, 1
    %s21 = scalar_select %p18, %s19, %s20
    %p24 = pneg %p18
    %p25 = scmp.eq.s32.totalorder %s9, 1
    %p26 = por %p24, %p25
    %p27 = scmp.ne.s32.totalorder %s19, %s22
    %p28 = scmp.eq.s32.totalorder %s9, 0
    %p29 = por %p27, %p28
    %p30 = scmp.ne.s32.totalorder %s19, %s22
    %p31 = scmp.eq.s32.totalorder %s14, 1
    %p32 = por %p30, %p31
    %p33 = scmp.ne.s32.totalorder %s22, %s23
    %p34 = scmp.eq.s32.totalorder %s14, 0
    %p35 = por %p33, %p34
    %p36 = scmp.ne.s32.totalorder %s22, %s23
    %p37 = scmp.eq.s32.totalorder %s15, 1
    %p38 = por %p36, %p37
    %p40 = scmp.ne.s32.totalorder %s23, %s39
    %p41 = scmp.eq.s32.totalorder %s15, 0
    %p42 = por %p40, %p41
    %s44 = sadd.s32 %s43, 1
    %p47 = scmp.eq.s32.totalorder %s9, 1
    %p48 = scmp.ne.s32.totalorder %s43, %s45
    %p49 = scmp.eq.s32.totalorder %s9, 0
    %p50 = por %p48, %p49
    %p51 = scmp.ne.s32.totalorder %s43, %s45
    %p52 = scmp.eq.s32.totalorder %s14, 1
    %p53 = por %p51, %p52
    %p54 = scmp.ne.s32.totalorder %s45, %s46
    %p55 = scmp.eq.s32.totalorder %s14, 0
    %p56 = por %p54, %p55
    %p57 = scmp.ne.s32.totalorder %s45, %s46
    %p58 = scmp.eq.s32.totalorder %s15, 1
    %p59 = por %p57, %p58
    %p61 = scmp.ne.s32.totalorder %s46, %s60
    %p62 = scmp.eq.s32.totalorder %s15, 0
    %p63 = por %p61, %p62
    %s65 = sadd.s32 %s64, 1
    %p68 = scmp.eq.s32.totalorder %s9, 1
    %p69 = scmp.ne.s32.totalorder %s64, %s66
    %p70 = scmp.eq.s32.totalorder %s9, 0
    %p71 = por %p69, %p70
    %p72 = scmp.ne.s32.totalorder %s64, %s66
    %p73 = scmp.eq.s32.totalorder %s14, 1
    %p74 = por %p72, %p73
    %p75 = scmp.ne.s32.totalorder %s66, %s67
    %p76 = scmp.eq.s32.totalorder %s14, 0
    %p77 = por %p75, %p76
    %p78 = scmp.ne.s32.totalorder %s66, %s67
    %p79 = scmp.eq.s32.totalorder %s15, 1
    %p80 = por %p78, %p79
    %p82 = scmp.ne.s32.totalorder %s67, %s81
    %p83 = scmp.eq.s32.totalorder %s15, 0
    %p84 = por %p82, %p83
    %s85 = ssub.s32 %s9, %s16
    %p86 = scmp.eq.s32.totalorder %s85, 0
    %s88 = sadd.s32 %s87, 1
    %s89 = scalar_select %p86, %s87, %s88
    %p92 = pneg %p86
    %p93 = scmp.eq.s32.totalorder %s9, 1
    %p94 = por %p92, %p93
    %p95 = scmp.ne.s32.totalorder %s87, %s90
    %p96 = scmp.eq.s32.totalorder %s9, 0
    %p97 = por %p95, %p96
    %p98 = scmp.ne.s32.totalorder %s87, %s90
    %p99 = scmp.eq.s32.totalorder %s14, 1
    %p100 = por %p98, %p99
    %p101 = scmp.ne.s32.totalorder %s90, %s91
    %p102 = scmp.eq.s32.totalorder %s14, 0
    %p103 = por %p101, %p102
    %p104 = scmp.ne.s32.totalorder %s90, %s91
    %p105 = scmp.eq.s32.totalorder %s15, 1
    %p106 = por %p104, %p105
    %p108 = scmp.ne.s32.totalorder %s91, %s107
    %p109 = scmp.eq.s32.totalorder %s15, 0
    %p110 = por %p108, %p109
    %p111 = scmp.le.s32.totalorder 1, %s9
    %p112 = scmp.lt.s32.totalorder %s9, 3
    %p113 = pnand %p111, %p112
    %p114 = pneg %p113
    // Predicated region
    $region9: #{graph_transformer_forward.19} parent=5 // pred_check
      _
    $region10: #{graph_transformer_forward.19} parent=5 // pred_check_branch
      %116 = sbr.rel (%p113) target = $region12
    $region11: #{graph_transformer_forward.19} parent=5 // pred_region
      %s117 = ssub.s32 %s9, 1
      // Predicated region
      $region13: #{graph_transformer_forward.19} parent=11 // pred_check
        %p118 = pneg %p56
      $region14: #{graph_transformer_forward.19} parent=11 // pred_check_branch
        %120 = sbr.rel (%p118) target = $region16
      $region15: #{graph_transformer_forward.19} parent=11 // pred_region
        _
      $region16: #{graph_transformer_forward.19} parent=11 // pred_fallthru
        _
      // Predicated region
      $region17: #{graph_transformer_forward.19} parent=11 // pred_check
        %p121 = pneg %p77
      $region18: #{graph_transformer_forward.19} parent=11 // pred_check_branch
        %123 = sbr.rel (%p121) target = $region20
      $region19: #{graph_transformer_forward.19} parent=11 // pred_region
        _
      $region20: #{graph_transformer_forward.19} parent=11 // pred_fallthru
        _
    $region12: #{graph_transformer_forward.19} parent=5 // pred_fallthru
      _
    %p124 = scmp.lt.s32.totalorder %s9, 2
    // Predicated region
    $region21: #{graph_transformer_forward.19} parent=5 // pred_check
      %p125 = pneg %p124
    $region22: #{graph_transformer_forward.19} parent=5 // pred_check_branch
      %127 = sbr.rel (%p125) target = $region24
    $region23: #{graph_transformer_forward.19} parent=5 // pred_region
      // Predicated region
      $region25: #{graph_transformer_forward.19} parent=23 // pred_check
        %p128 = pneg %p29
      $region26: #{graph_transformer_forward.19} parent=23 // pred_check_branch
        %130 = sbr.rel (%p128) target = $region28
      $region27: #{graph_transformer_forward.19} parent=23 // pred_region
        %p131 = scmp.lt.s32.totalorder %s9, 1
        %s132 = scalar_select %p131, %s9, 1
        %s133 = smul.addr %s132, 8
        %s134 = scalar_lea.vmem %s0, %s133
      $region28: #{graph_transformer_forward.19} parent=23 // pred_fallthru
        _
    $region24: #{graph_transformer_forward.19} parent=5 // pred_fallthru
      _
    %p135 = scmp.le.s32.totalorder 1, %s9
    %p136 = scmp.lt.s32.totalorder %s9, 3
    %p137 = pnand %p135, %p136
    %p138 = pneg %p137
    // Predicated region
    $region29: #{graph_transformer_forward.19} parent=5 // pred_check
      _
    $region30: #{graph_transformer_forward.19} parent=5 // pred_check_branch
      %140 = sbr.rel (%p137) target = $region32
    $region31: #{graph_transformer_forward.19} parent=5 // pred_region
      %s141 = ssub.s32 %s9, 1
      %p142 = scmp.lt.s32.totalorder %s14, 1
      %s143 = scalar_select %p142, %s14, 1
      %s144 = smul.addr %s143, 8
      %s145 = scalar_lea.vmem %s0, %s144
      %p146 = pneg %p35
      %p147 = pneg %p32
      %p148 = pneg %p56
      %p149 = pneg %p53
      %p150 = pneg %p77
      %p151 = pneg %p74
      %p152 = pneg %p103
      %p153 = pneg %p100
      %p154 = scmp.lt.s32.totalorder %s14, 1
      %s155 = scalar_select %p154, %s14, 1
      %s156 = smul.addr %s155, 8
      %s157 = scalar_lea.vmem %s3, %s156
      %p158 = scmp.lt.s32.totalorder %s14, 1
      %s159 = scalar_select %p158, %s14, 1
      %s160 = smul.addr %s159, 8
      %s161 = scalar_lea.vmem %s0, %s160
      %p162 = scmp.lt.s32.totalorder %s14, 1
      %s163 = scalar_select %p162, %s14, 1
      %s164 = smul.addr %s163, 8
      %s165 = scalar_lea.vmem %s3, %s164
      %v167 = vld [vmem:[%s161] sm:$0xff]
      %v168 = vpack.c.bf16 %v167, %v167
      %v169 = vld [vmem:[%s1] sm:$0xf]
      %v170 = vld [vmem:[%s1 + $0x4] sm:$0xf]
      %v171 = vld [vmem:[%s1 + $0x8] sm:$0xf]
      %v172 = vld [vmem:[%s1 + $0xc] sm:$0xf]
      %v173 = vld [vmem:[%s1 + $0x10] sm:$0xf]
      %v174 = vld [vmem:[%s1 + $0x14] sm:$0xf]
      %v175 = vld [vmem:[%s1 + $0x18] sm:$0xf]
      %v176 = vld [vmem:[%s1 + $0x1c] sm:$0xf]
      %v177 = vld [vmem:[%s1 + $0x20] sm:$0xf]
      %v178 = vld [vmem:[%s1 + $0x24] sm:$0xf]
      %v179 = vld [vmem:[%s1 + $0x28] sm:$0xf]
      %v180 = vld [vmem:[%s1 + $0x2c] sm:$0xf]
      %v181 = vld [vmem:[%s1 + $0x30] sm:$0xf]
      %v182 = vld [vmem:[%s1 + $0x34] sm:$0xf]
      %v183 = vld [vmem:[%s1 + $0x38] sm:$0xf]
      %v184 = vld [vmem:[%s1 + $0x3c] sm:$0xf]
      %v185 = vld [vmem:[%s2] sm:$0x1]
      %v187 = vlaneseq
      %v188 = vshrl.u32 %v187, 7
      %v189 = vsub.s32 0, %v188
      %v190 = vrot.slane %v185, %v189
      %v208 = vunpack.c.l.b16 %v169
      %v209 = vunpack.c.l.b16 %v170
      %v210 = vunpack.c.l.b16 %v171
      %v211 = vunpack.c.l.b16 %v172
      %v212 = vunpack.c.l.b16 %v173
      %v213 = vunpack.c.l.b16 %v174
      %v214 = vunpack.c.l.b16 %v175
      %v215 = vunpack.c.l.b16 %v176
      %v216 = vunpack.c.l.b16 %v177
      %v217 = vunpack.c.l.b16 %v178
      %v218 = vunpack.c.l.b16 %v179
      %v219 = vunpack.c.l.b16 %v180
      %v220 = vunpack.c.l.b16 %v181
      %v221 = vunpack.c.l.b16 %v182
      %v222 = vunpack.c.l.b16 %v183
      %v223 = vunpack.c.l.b16 %v184
      %v224 = vpack.c.b16 %v209, %v208
      %v225 = vpack.c.b16 %v211, %v210
      %v226 = vpack.c.b16 %v213, %v212
      %v227 = vpack.c.b16 %v215, %v214
      %v228 = vpack.c.b16 %v217, %v216
      %v229 = vpack.c.b16 %v219, %v218
      %v230 = vpack.c.b16 %v221, %v220
      %v231 = vpack.c.b16 %v223, %v222
      %240 = vmatprep.subr.bf16.mxu0 0
      %241 = vmatpush1.bf16.msra.mxu0 %v231
      %242 = vmatprep.subr.bf16.mxu0 0
      %243 = vmatpush1.bf16.msra.mxu0 %v230
      %244 = vmatprep.subr.bf16.mxu0 0
      %245 = vmatpush1.bf16.msra.mxu0 %v229
      %246 = vmatprep.subr.bf16.mxu0 0
      %247 = vmatpush1.bf16.msra.mxu0 %v228
      %248 = vmatprep.subr.bf16.mxu0 0
      %249 = vmatpush1.bf16.msra.mxu0 %v227
      %250 = vmatprep.subr.bf16.mxu0 0
      %251 = vmatpush1.bf16.msra.mxu0 %v226
      %252 = vmatprep.subr.bf16.mxu0 0
      %253 = vmatpush1.bf16.msra.mxu0 %v225
      %254 = vmatprep.subr.bf16.mxu0 0
      %255 = vmatpush1.bf16.msra.mxu0 %v224
      %256 = vmatprep.subr.bf16.mxu0 0
      %257 = vmatpush2.bf16.msra.mxu0 0
      %258 = vmatprep.subr.bf16.mxu0 0
      %259 = vmatpush2.bf16.msra.mxu0 0
      %260 = vmatprep.subr.bf16.mxu0 0
      %261 = vmatpush2.bf16.msra.mxu0 0
      %262 = vmatprep.subr.bf16.mxu0 0
      %263 = vmatpush2.bf16.msra.mxu0 0
      %264 = vmatprep.subr.bf16.mxu0 0
      %265 = vmatpush2.bf16.msra.mxu0 0
      %266 = vmatprep.subr.bf16.mxu0 0
      %267 = vmatpush2.bf16.msra.mxu0 0
      %268 = vmatprep.subr.bf16.mxu0 0
      %269 = vmatpush2.bf16.msra.mxu0 0
      %270 = vmatprep.subr.bf16.mxu0 0
      %271 = vmatpush2.bf16.msra.mxu0 0
      %272 = vmatprep.mubr.bf16.mxu0 0
      %273 = vmatmul.mubr.bf16.gmra.mxu0 %v168
      %v274 = vpop.f32.mrf.mxu0
      %v275 = vadd.f32 %v190, %v274
      %v276 = vpop.f32.mrf.mxu0
      %v277 = vpop.f32.mrf.mxu0
      %v278 = vpop.f32.mrf.mxu0
      %279 = vdwg.mxu0
      %280 = vst [vmem:[%s165] sm:$0xff] %v275
      %p281 = scmp.lt.s32.totalorder %s14, 1
      %s282 = scalar_select %p281, %s14, 1
      %s283 = smul.addr %s282, 8
      %s284 = scalar_lea.vmem %s3, %s283
      // Predicated region
      $region33: #{graph_transformer_forward.19} parent=31 // pred_check
        %p285 = pneg %p100
      $region34: #{graph_transformer_forward.19} parent=31 // pred_check_branch
        %287 = sbr.rel (%p285) target = $region36
      $region35: #{graph_transformer_forward.19} parent=31 // pred_region
        _
      $region36: #{graph_transformer_forward.19} parent=31 // pred_fallthru
        _
    $region32: #{graph_transformer_forward.19} parent=5 // pred_fallthru
      _
    %p288 = scmp.le.s32.totalorder 2, %s9
    // Predicated region
    $region37: #{graph_transformer_forward.19} parent=5 // pred_check
      %p289 = pneg %p288
    $region38: #{graph_transformer_forward.19} parent=5 // pred_check_branch
      %291 = sbr.rel (%p289) target = $region40
    $region39: #{graph_transformer_forward.19} parent=5 // pred_region
      %s292 = ssub.s32 %s9, 2
      // Predicated region
      $region41: #{graph_transformer_forward.19} parent=39 // pred_check
        %p293 = pneg %p106
      $region42: #{graph_transformer_forward.19} parent=39 // pred_check_branch
        %295 = sbr.rel (%p293) target = $region44
      $region43: #{graph_transformer_forward.19} parent=39 // pred_region
        %p296 = scmp.lt.s32.totalorder %s15, 1
        %s297 = scalar_select %p296, %s15, 1
        %s298 = smul.addr %s297, 8
        %s299 = scalar_lea.vmem %s3, %s298
      $region44: #{graph_transformer_forward.19} parent=39 // pred_fallthru
        _
    $region40: #{graph_transformer_forward.19} parent=5 // pred_fallthru
      _
  $region6: #{graph_transformer_forward.19} parent=0 // loop_footer
    %s13 = sadd.s32 1, %s9
  $region7: #{graph_transformer_forward.19} parent=0 // loop_footer_branch
    %8 = sbr.rel target = $region3
  $region8: #{graph_transformer_forward.19} parent=0 // loop_exit
    _

// kernel: graph_transformer_forward.10
$region0: #{graph_transformer_forward.10}
  #allocation0 [shape = 'u32[]', space=smem, size = 0x4, offset = 0x4, fixed_abs, tag = 'smem constant byte address 0x4 - core index']
  #allocation1 [shape = 'u32[144,128]{1,0:T(1,128)}', space=vmem, size = 0x12000, scoped, tag = 'internal scratch']
  %s0 = inlined_call_operand.vmem [shape: f32[5,16,128], index: 0, kind: input, shape index: {}]
  %s1 = inlined_call_operand.vmem [shape: bf16[128,128], index: 1, kind: input, shape index: {}]
  %s2 = inlined_call_operand.vmem [shape: f32[1,128], index: 2, kind: input, shape index: {}]
  %s3 = inlined_call_operand.vmem [shape: bf16[128,256], index: 3, kind: input, shape index: {}]
  %s4 = inlined_call_operand.vmem [shape: f32[1,256], index: 4, kind: input, shape index: {}]
  %s5 = inlined_call_operand.vmem [shape: bf16[128,128], index: 5, kind: input, shape index: {}]
  %s6 = inlined_call_operand.vmem [shape: f32[1,128], index: 6, kind: input, shape index: {}]
  %s7 = inlined_call_operand.vmem [shape: bf16[128,128], index: 7, kind: input, shape index: {}]
  %s8 = inlined_call_operand.vmem [shape: f32[1,128], index: 8, kind: input, shape index: {}]
  %s9 = inlined_call_operand.vmem [shape: f32[1,128], index: 9, kind: input, shape index: {}]
  %s10 = inlined_call_operand.vmem [shape: f32[16,128], index: 10, kind: output, shape index: {}]
  %s11 = sld [smem:[#allocation0]]
  $region111: #{graph_transformer_forward.10} parent=0
    _
  %s13 = ssub.s32 1, %s11
  %s14 = scalar_select 0, %s13, %s11
  $region1: #{graph_transformer_forward.10} parent=0
    #allocation2 [shape = 'u8[40960]{0}', space=vmem, size = 0xa000, scoped, tag = 'input window, operand 0']
    loop: start=0, step=1, limit=4
    $region2: #{graph_transformer_forward.10} parent=1 // loop_pre_header
      _
    $region3: #{graph_transformer_forward.10} parent=1 // loop_header
      %s16 = sphi 0, %s20
      %p17 = scmp.ge.s32.totalorder %s16, 4
      %s26 = sphi 0, %s28
      %s29 = sphi 0, %s26
      %s30 = sphi 0, %s29
      %s46 = sphi 0, %s30
      %s50 = sphi 0, %s50
      %s52 = sphi 0, %s50
      %s53 = sphi 0, %s52
      %s67 = sphi 0, %s53
      %s71 = sphi 0, %s71
      %s73 = sphi 0, %s71
      %s74 = sphi 0, %s73
      %s88 = sphi 0, %s74
      %s92 = sphi 0, %s92
      %s94 = sphi 0, %s92
      %s95 = sphi 0, %s94
      %s109 = sphi 0, %s95
      %s113 = sphi 0, %s113
      %s115 = sphi 0, %s113
      %s116 = sphi 0, %s115
      %s130 = sphi 0, %s116
      %s134 = sphi 0, %s134
      %s136 = sphi 0, %s134
      %s137 = sphi 0, %s136
      %s151 = sphi 0, %s137
      %s155 = sphi 0, %s155
      %s157 = sphi 0, %s155
      %s158 = sphi 0, %s157
      %s172 = sphi 0, %s158
      %s176 = sphi 0, %s176
      %s178 = sphi 0, %s176
      %s179 = sphi 0, %s178
      %s193 = sphi 0, %s179
      %s197 = sphi 0, %s197
      %s199 = sphi 0, %s197
      %s200 = sphi 0, %s199
      %s214 = sphi 0, %s200
      %s218 = sphi 0, %s218
      %s220 = sphi 0, %s218
      %s221 = sphi 0, %s220
      %s235 = sphi 0, %s221
      %s241 = sphi 0, %s243
      %s244 = sphi 0, %s241
      %s245 = sphi 0, %s244
      %s261 = sphi 0, %s245
    $region4: #{graph_transformer_forward.10} parent=1 // loop_header_branch
      %19 = sbr.rel (%p17) target = $region8
    $region5: #{graph_transformer_forward.10} parent=1 // loop_body
      %s21 = ssub.s32 %s16, 1
      %s22 = ssub.s32 %s16, 2
      %s23 = sadd.s32 %s16, 1
      %s24 = ssub.s32 %s16, %s23
      %p25 = scmp.eq.s32.totalorder %s24, 0
      %s27 = sadd.s32 %s26, 1
      %s28 = scalar_select %p25, %s26, %s27
      %p31 = pneg %p25
      %p32 = scmp.eq.s32.totalorder %s16, 1
      %p33 = por %p31, %p32
      %p34 = scmp.ne.s32.totalorder %s26, %s29
      %p35 = scmp.eq.s32.totalorder %s16, 0
      %p36 = por %p34, %p35
      %p37 = scmp.ne.s32.totalorder %s26, %s29
      %p38 = scmp.eq.s32.totalorder %s21, 1
      %p39 = por %p37, %p38
      %p40 = scmp.ne.s32.totalorder %s29, %s30
      %p41 = scmp.eq.s32.totalorder %s21, 0
      %p42 = por %p40, %p41
      %p43 = scmp.ne.s32.totalorder %s29, %s30
      %p44 = scmp.eq.s32.totalorder %s22, 1
      %p45 = por %p43, %p44
      %p47 = scmp.ne.s32.totalorder %s30, %s46
      %p48 = scmp.eq.s32.totalorder %s22, 0
      %p49 = por %p47, %p48
      %s51 = sadd.s32 %s50, 1
      %p54 = scmp.eq.s32.totalorder %s16, 1
      %p55 = scmp.ne.s32.totalorder %s50, %s52
      %p56 = scmp.eq.s32.totalorder %s16, 0
      %p57 = por %p55, %p56
      %p58 = scmp.ne.s32.totalorder %s50, %s52
      %p59 = scmp.eq.s32.totalorder %s21, 1
      %p60 = por %p58, %p59
      %p61 = scmp.ne.s32.totalorder %s52, %s53
      %p62 = scmp.eq.s32.totalorder %s21, 0
      %p63 = por %p61, %p62
      %p64 = scmp.ne.s32.totalorder %s52, %s53
      %p65 = scmp.eq.s32.totalorder %s22, 1
      %p66 = por %p64, %p65
      %p68 = scmp.ne.s32.totalorder %s53, %s67
      %p69 = scmp.eq.s32.totalorder %s22, 0
      %p70 = por %p68, %p69
      %s72 = sadd.s32 %s71, 1
      %p75 = scmp.eq.s32.totalorder %s16, 1
      %p76 = scmp.ne.s32.totalorder %s71, %s73
      %p77 = scmp.eq.s32.totalorder %s16, 0
      %p78 = por %p76, %p77
      %p79 = scmp.ne.s32.totalorder %s71, %s73
      %p80 = scmp.eq.s32.totalorder %s21, 1
      %p81 = por %p79, %p80
      %p82 = scmp.ne.s32.totalorder %s73, %s74
      %p83 = scmp.eq.s32.totalorder %s21, 0
      %p84 = por %p82, %p83
      %p85 = scmp.ne.s32.totalorder %s73, %s74
      %p86 = scmp.eq.s32.totalorder %s22, 1
      %p87 = por %p85, %p86
      %p89 = scmp.ne.s32.totalorder %s74, %s88
      %p90 = scmp.eq.s32.totalorder %s22, 0
      %p91 = por %p89, %p90
      %s93 = sadd.s32 %s92, 1
      %p96 = scmp.eq.s32.totalorder %s16, 1
      %p97 = scmp.ne.s32.totalorder %s92, %s94
      %p98 = scmp.eq.s32.totalorder %s16, 0
      %p99 = por %p97, %p98
      %p100 = scmp.ne.s32.totalorder %s92, %s94
      %p101 = scmp.eq.s32.totalorder %s21, 1
      %p102 = por %p100, %p101
      %p103 = scmp.ne.s32.totalorder %s94, %s95
      %p104 = scmp.eq.s32.totalorder %s21, 0
      %p105 = por %p103, %p104
      %p106 = scmp.ne.s32.totalorder %s94, %s95
      %p107 = scmp.eq.s32.totalorder %s22, 1
      %p108 = por %p106, %p107
      %p110 = scmp.ne.s32.totalorder %s95, %s109
      %p111 = scmp.eq.s32.totalorder %s22, 0
      %p112 = por %p110, %p111
      %s114 = sadd.s32 %s113, 1
      %p117 = scmp.eq.s32.totalorder %s16, 1
      %p118 = scmp.ne.s32.totalorder %s113, %s115
      %p119 = scmp.eq.s32.totalorder %s16, 0
      %p120 = por %p118, %p119
      %p121 = scmp.ne.s32.totalorder %s113, %s115
      %p122 = scmp.eq.s32.totalorder %s21, 1
      %p123 = por %p121, %p122
      %p124 = scmp.ne.s32.totalorder %s115, %s116
      %p125 = scmp.eq.s32.totalorder %s21, 0
      %p126 = por %p124, %p125
      %p127 = scmp.ne.s32.totalorder %s115, %s116
      %p128 = scmp.eq.s32.totalorder %s22, 1
      %p129 = por %p127, %p128
      %p131 = scmp.ne.s32.totalorder %s116, %s130
      %p132 = scmp.eq.s32.totalorder %s22, 0
      %p133 = por %p131, %p132
      %s135 = sadd.s32 %s134, 1
      %p138 = scmp.eq.s32.totalorder %s16, 1
      %p139 = scmp.ne.s32.totalorder %s134, %s136
      %p140 = scmp.eq.s32.totalorder %s16, 0
      %p141 = por %p139, %p140
      %p142 = scmp.ne.s32.totalorder %s134, %s136
      %p143 = scmp.eq.s32.totalorder %s21, 1
      %p144 = por %p142, %p143
      %p145 = scmp.ne.s32.totalorder %s136, %s137
      %p146 = scmp.eq.s32.totalorder %s21, 0
      %p147 = por %p145, %p146
      %p148 = scmp.ne.s32.totalorder %s136, %s137
      %p149 = scmp.eq.s32.totalorder %s22, 1
      %p150 = por %p148, %p149
      %p152 = scmp.ne.s32.totalorder %s137, %s151
      %p153 = scmp.eq.s32.totalorder %s22, 0
      %p154 = por %p152, %p153
      %s156 = sadd.s32 %s155, 1
      %p159 = scmp.eq.s32.totalorder %s16, 1
      %p160 = scmp.ne.s32.totalorder %s155, %s157
      %p161 = scmp.eq.s32.totalorder %s16, 0
      %p162 = por %p160, %p161
      %p163 = scmp.ne.s32.totalorder %s155, %s157
      %p164 = scmp.eq.s32.totalorder %s21, 1
      %p165 = por %p163, %p164
      %p166 = scmp.ne.s32.totalorder %s157, %s158
      %p167 = scmp.eq.s32.totalorder %s21, 0
      %p168 = por %p166, %p167
      %p169 = scmp.ne.s32.totalorder %s157, %s158
      %p170 = scmp.eq.s32.totalorder %s22, 1
      %p171 = por %p169, %p170
      %p173 = scmp.ne.s32.totalorder %s158, %s172
      %p174 = scmp.eq.s32.totalorder %s22, 0
      %p175 = por %p173, %p174
      %s177 = sadd.s32 %s176, 1
      %p180 = scmp.eq.s32.totalorder %s16, 1
      %p181 = scmp.ne.s32.totalorder %s176, %s178
      %p182 = scmp.eq.s32.totalorder %s16, 0
      %p183 = por %p181, %p182
      %p184 = scmp.ne.s32.totalorder %s176, %s178
      %p185 = scmp.eq.s32.totalorder %s21, 1
      %p186 = por %p184, %p185
      %p187 = scmp.ne.s32.totalorder %s178, %s179
      %p188 = scmp.eq.s32.totalorder %s21, 0
      %p189 = por %p187, %p188
      %p190 = scmp.ne.s32.totalorder %s178, %s179
      %p191 = scmp.eq.s32.totalorder %s22, 1
      %p192 = por %p190, %p191
      %p194 = scmp.ne.s32.totalorder %s179, %s193
      %p195 = scmp.eq.s32.totalorder %s22, 0
      %p196 = por %p194, %p195
      %s198 = sadd.s32 %s197, 1
      %p201 = scmp.eq.s32.totalorder %s16, 1
      %p202 = scmp.ne.s32.totalorder %s197, %s199
      %p203 = scmp.eq.s32.totalorder %s16, 0
      %p204 = por %p202, %p203
      %p205 = scmp.ne.s32.totalorder %s197, %s199
      %p206 = scmp.eq.s32.totalorder %s21, 1
      %p207 = por %p205, %p206
      %p208 = scmp.ne.s32.totalorder %s199, %s200
      %p209 = scmp.eq.s32.totalorder %s21, 0
      %p210 = por %p208, %p209
      %p211 = scmp.ne.s32.totalorder %s199, %s200
      %p212 = scmp.eq.s32.totalorder %s22, 1
      %p213 = por %p211, %p212
      %p215 = scmp.ne.s32.totalorder %s200, %s214
      %p216 = scmp.eq.s32.totalorder %s22, 0
      %p217 = por %p215, %p216
      %s219 = sadd.s32 %s218, 1
      %p222 = scmp.eq.s32.totalorder %s16, 1
      %p223 = scmp.ne.s32.totalorder %s218, %s220
      %p224 = scmp.eq.s32.totalorder %s16, 0
      %p225 = por %p223, %p224
      %p226 = scmp.ne.s32.totalorder %s218, %s220
      %p227 = scmp.eq.s32.totalorder %s21, 1
      %p228 = por %p226, %p227
      %p229 = scmp.ne.s32.totalorder %s220, %s221
      %p230 = scmp.eq.s32.totalorder %s21, 0
      %p231 = por %p229, %p230
      %p232 = scmp.ne.s32.totalorder %s220, %s221
      %p233 = scmp.eq.s32.totalorder %s22, 1
      %p234 = por %p232, %p233
      %p236 = scmp.ne.s32.totalorder %s221, %s235
      %p237 = scmp.eq.s32.totalorder %s22, 0
      %p238 = por %p236, %p237
      %s239 = ssub.s32 %s16, %s23
      %p240 = scmp.eq.s32.totalorder %s239, 0
      %s242 = sadd.s32 %s241, 1
      %s243 = scalar_select %p240, %s241, %s242
      %p246 = pneg %p240
      %p247 = scmp.eq.s32.totalorder %s16, 1
      %p248 = por %p246, %p247
      %p249 = scmp.ne.s32.totalorder %s241, %s244
      %p250 = scmp.eq.s32.totalorder %s16, 0
      %p251 = por %p249, %p250
      %p252 = scmp.ne.s32.totalorder %s241, %s244
      %p253 = scmp.eq.s32.totalorder %s21, 1
      %p254 = por %p252, %p253
      %p255 = scmp.ne.s32.totalorder %s244, %s245
      %p256 = scmp.eq.s32.totalorder %s21, 0
      %p257 = por %p255, %p256
      %p258 = scmp.ne.s32.totalorder %s244, %s245
      %p259 = scmp.eq.s32.totalorder %s22, 1
      %p260 = por %p258, %p259
      %p262 = scmp.ne.s32.totalorder %s245, %s261
      %p263 = scmp.eq.s32.totalorder %s22, 0
      %p264 = por %p262, %p263
      %p265 = scmp.le.s32.totalorder 1, %s16
      %p266 = scmp.lt.s32.totalorder %s16, 3
      %p267 = pnand %p265, %p266
      %p268 = pneg %p267
      // Predicated region
      $region9: #{graph_transformer_forward.10} parent=5 // pred_check
        _
      $region10: #{graph_transformer_forward.10} parent=5 // pred_check_branch
        %270 = sbr.rel (%p267) target = $region12
      $region11: #{graph_transformer_forward.10} parent=5 // pred_region
        %s271 = ssub.s32 %s16, 1
        // Predicated region
        $region13: #{graph_transformer_forward.10} parent=11 // pred_check
          %p272 = pneg %p63
        $region14: #{graph_transformer_forward.10} parent=11 // pred_check_branch
          %274 = sbr.rel (%p272) target = $region16
        $region15: #{graph_transformer_forward.10} parent=11 // pred_region
          _
        $region16: #{graph_transformer_forward.10} parent=11 // pred_fallthru
          _
        // Predicated region
        $region17: #{graph_transformer_forward.10} parent=11 // pred_check
          %p275 = pneg %p84
        $region18: #{graph_transformer_forward.10} parent=11 // pred_check_branch
          %277 = sbr.rel (%p275) target = $region20
        $region19: #{graph_transformer_forward.10} parent=11 // pred_region
          _
        $region20: #{graph_transformer_forward.10} parent=11 // pred_fallthru
          _
        // Predicated region
        $region21: #{graph_transformer_forward.10} parent=11 // pred_check
          %p278 = pneg %p105
        $region22: #{graph_transformer_forward.10} parent=11 // pred_check_branch
          %280 = sbr.rel (%p278) target = $region24
        $region23: #{graph_transformer_forward.10} parent=11 // pred_region
          _
        $region24: #{graph_transformer_forward.10} parent=11 // pred_fallthru
          _
        // Predicated region
        $region25: #{graph_transformer_forward.10} parent=11 // pred_check
          %p281 = pneg %p126
        $region26: #{graph_transformer_forward.10} parent=11 // pred_check_branch
          %283 = sbr.rel (%p281) target = $region28
        $region27: #{graph_transformer_forward.10} parent=11 // pred_region
          _
        $region28: #{graph_transformer_forward.10} parent=11 // pred_fallthru
          _
        // Predicated region
        $region29: #{graph_transformer_forward.10} parent=11 // pred_check
          %p284 = pneg %p147
        $region30: #{graph_transformer_forward.10} parent=11 // pred_check_branch
          %286 = sbr.rel (%p284) target = $region32
        $region31: #{graph_transformer_forward.10} parent=11 // pred_region
          _
        $region32: #{graph_transformer_forward.10} parent=11 // pred_fallthru
          _
        // Predicated region
        $region33: #{graph_transformer_forward.10} parent=11 // pred_check
          %p287 = pneg %p168
        $region34: #{graph_transformer_forward.10} parent=11 // pred_check_branch
          %289 = sbr.rel (%p287) target = $region36
        $region35: #{graph_transformer_forward.10} parent=11 // pred_region
          _
        $region36: #{graph_transformer_forward.10} parent=11 // pred_fallthru
          _
        // Predicated region
        $region37: #{graph_transformer_forward.10} parent=11 // pred_check
          %p290 = pneg %p189
        $region38: #{graph_transformer_forward.10} parent=11 // pred_check_branch
          %292 = sbr.rel (%p290) target = $region40
        $region39: #{graph_transformer_forward.10} parent=11 // pred_region
          _
        $region40: #{graph_transformer_forward.10} parent=11 // pred_fallthru
          _
        // Predicated region
        $region41: #{graph_transformer_forward.10} parent=11 // pred_check
          %p293 = pneg %p210
        $region42: #{graph_transformer_forward.10} parent=11 // pred_check_branch
          %295 = sbr.rel (%p293) target = $region44
        $region43: #{graph_transformer_forward.10} parent=11 // pred_region
          _
        $region44: #{graph_transformer_forward.10} parent=11 // pred_fallthru
          _
        // Predicated region
        $region45: #{graph_transformer_forward.10} parent=11 // pred_check
          %p296 = pneg %p231
        $region46: #{graph_transformer_forward.10} parent=11 // pred_check_branch
          %298 = sbr.rel (%p296) target = $region48
        $region47: #{graph_transformer_forward.10} parent=11 // pred_region
          _
        $region48: #{graph_transformer_forward.10} parent=11 // pred_fallthru
          _
      $region12: #{graph_transformer_forward.10} parent=5 // pred_fallthru
        _
      %p299 = scmp.lt.s32.totalorder %s16, 2
      // Predicated region
      $region49: #{graph_transformer_forward.10} parent=5 // pred_check
        %p300 = pneg %p299
      $region50: #{graph_transformer_forward.10} parent=5 // pred_check_branch
        %302 = sbr.rel (%p300) target = $region52
      $region51: #{graph_transformer_forward.10} parent=5 // pred_region
        // Predicated region
        $region53: #{graph_transformer_forward.10} parent=51 // pred_check
          %p303 = pneg %p36
        $region54: #{graph_transformer_forward.10} parent=51 // pred_check_branch
          %305 = sbr.rel (%p303) target = $region56
        $region55: #{graph_transformer_forward.10} parent=51 // pred_region
          %s306 = sand.u32 %s26, 1
          %s307 = sand.u32 %s26, 1
          %s308 = smul.addr %s307, 40
          %s309 = scalar_lea.vmem [#allocation2], %s308
          %s310 = smul.addr %s16, 8
          %s311 = scalar_lea.vmem %s0, %s310
          // Predicated region
          $region57: #{graph_transformer_forward.10} parent=55 // pred_check
            _
          $region58: #{graph_transformer_forward.10} parent=55 // pred_check_branch
            %313 = sbr.rel (0) target = $region60
          $region59: #{graph_transformer_forward.10} parent=55 // pred_region
            // Predicated region
            $region61: #{graph_transformer_forward.10} parent=59 // pred_check
              _
            $region62: #{graph_transformer_forward.10} parent=59 // pred_check_branch
              %315 = sbr.rel (0) target = $region64
            $region63: #{graph_transformer_forward.10} parent=59 // pred_region
              // Predicated region
              $region76: #{graph_transformer_forward.10} parent=63 // pred_check
                _
              $region77: #{graph_transformer_forward.10} parent=63 // pred_check_branch
                %339 = sbr.rel (0) target = $region79
              $region78: #{graph_transformer_forward.10} parent=63 // pred_region
                loop: start=0, step=1, limit=1
                $region80: #{graph_transformer_forward.10} parent=78 // loop_pre_header
                  _
                $region81: #{graph_transformer_forward.10} parent=78 // loop_header
                  %s341 = sphi 0, %s345
                  %p342 = scmp.ge.s32.totalorder %s341, 1
                  %s346 = sphi %s311, %s311
                  %s347 = sphi %s309, %s309
                $region82: #{graph_transformer_forward.10} parent=78 // loop_header_branch
                  %344 = sbr.rel (%p342) target = $region86
                $region83: #{graph_transformer_forward.10} parent=78 // loop_body
                  %v348 = vld [vmem:[%s346] sm:$0xff]
                  %349 = vst [vmem:[%s347] sm:$0xff] %v348
                  %v350 = vld [vmem:[%s346 + $0x10] sm:$0xff]
                  %351 = vst [vmem:[%s347 + $0x8] sm:$0xff] %v350
                  %v352 = vld [vmem:[%s346 + $0x20] sm:$0xff]
                  %353 = vst [vmem:[%s347 + $0x10] sm:$0xff] %v352
                  %v354 = vld [vmem:[%s346 + $0x30] sm:$0xff]
                  %355 = vst [vmem:[%s347 + $0x18] sm:$0xff] %v354
                  %v356 = vld [vmem:[%s346 + $0x40] sm:$0xff]
                  %357 = vst [vmem:[%s347 + $0x20] sm:$0xff] %v356
                $region84: #{graph_transformer_forward.10} parent=78 // loop_footer
                  %s345 = sadd.s32 1, %s341
                $region85: #{graph_transformer_forward.10} parent=78 // loop_footer_branch
                  %340 = sbr.rel target = $region81
                $region86: #{graph_transformer_forward.10} parent=78 // loop_exit
                  _
              $region79: #{graph_transformer_forward.10} parent=63 // pred_fallthru
                _
              // Predicated region
              $region87: #{graph_transformer_forward.10} parent=63 // pred_check
                _
              $region88: #{graph_transformer_forward.10} parent=63 // pred_check_branch
                %359 = sbr.rel target = $region90
              $region89: #{graph_transformer_forward.10} parent=63 // pred_region
                _
              $region90: #{graph_transformer_forward.10} parent=63 // pred_fallthru
                _
            $region64: #{graph_transformer_forward.10} parent=59 // pred_fallthru
              _
            // Predicated region
            $region65: #{graph_transformer_forward.10} parent=59 // pred_check
              _
            $region66: #{graph_transformer_forward.10} parent=59 // pred_check_branch
              %317 = sbr.rel target = $region68
            $region67: #{graph_transformer_forward.10} parent=59 // pred_region
              %s319 = ssub.s32 256, 1
              loop: start=0, step=1, limit=1
              $region69: #{graph_transformer_forward.10} parent=67 // loop_pre_header
                _
              $region70: #{graph_transformer_forward.10} parent=67 // loop_header
                %s321 = sphi 0, %s325
                %p322 = scmp.ge.s32.totalorder %s321, 1
                %s326 = sphi %s311, %s311
                %s327 = sphi %s309, %s309
              $region71: #{graph_transformer_forward.10} parent=67 // loop_header_branch
                %324 = sbr.rel (%p322) target = $region75
              $region72: #{graph_transformer_forward.10} parent=67 // loop_body
                %v328 = vld [vmem:[%s326] sm:%s319]
                %329 = vst [vmem:[%s327] sm:%s319] %v328
                %v330 = vld [vmem:[%s326 + $0x10] sm:%s319]
                %331 = vst [vmem:[%s327 + $0x8] sm:%s319] %v330
                %v332 = vld [vmem:[%s326 + $0x20] sm:%s319]
                %333 = vst [vmem:[%s327 + $0x10] sm:%s319] %v332
                %v334 = vld [vmem:[%s326 + $0x30] sm:%s319]
                %335 = vst [vmem:[%s327 + $0x18] sm:%s319] %v334
                %v336 = vld [vmem:[%s326 + $0x40] sm:%s319]
                %337 = vst [vmem:[%s327 + $0x20] sm:%s319] %v336
              $region73: #{graph_transformer_forward.10} parent=67 // loop_footer
                %s325 = sadd.s32 1, %s321
              $region74: #{graph_transformer_forward.10} parent=67 // loop_footer_branch
                %320 = sbr.rel target = $region70
              $region75: #{graph_transformer_forward.10} parent=67 // loop_exit
                _
            $region68: #{graph_transformer_forward.10} parent=59 // pred_fallthru
              _
          $region60: #{graph_transformer_forward.10} parent=55 // pred_fallthru
            _
          %360 = vnop
        $region56: #{graph_transformer_forward.10} parent=51 // pred_fallthru
          _
      $region52: #{graph_transformer_forward.10} parent=5 // pred_fallthru
        _
      %p361 = scmp.le.s32.totalorder 1, %s16
      %p362 = scmp.lt.s32.totalorder %s16, 3
      %p363 = pnand %p361, %p362
      %p364 = pneg %p363
      // Predicated region
      $region91: #{graph_transformer_forward.10} parent=5 // pred_check
        _
      $region92: #{graph_transformer_forward.10} parent=5 // pred_check_branch
        %366 = sbr.rel (%p363) target = $region94
      $region93: #{graph_transformer_forward.10} parent=5 // pred_region
        %s367 = ssub.s32 %s16, 1
        %s368 = sand.u32 %s29, 1
        %s369 = sand.u32 %s29, 1
        %s370 = smul.addr %s369, 40
        %s371 = scalar_lea.vmem [#allocation2], %s370
        // Predicated region
        $region95: #{graph_transformer_forward.10} parent=93 // pred_check
          %p372 = pneg %p42
        $region96: #{graph_transformer_forward.10} parent=93 // pred_check_branch
          %374 = sbr.rel (%p372) target = $region98
        $region97: #{graph_transformer_forward.10} parent=93 // pred_region
          _
        $region98: #{graph_transformer_forward.10} parent=93 // pred_fallthru
          _
        %s375 = sand.u32 %s29, 1
        %s376 = sand.u32 %s29, 1
        %s377 = smul.addr %s376, 40
        %s378 = scalar_lea.vmem [#allocation2], %s377
        %p379 = pneg %p42
        %p380 = pneg %p39
        %p381 = pneg %p63
        %p382 = pneg %p60
        %p383 = pneg %p84
        %p384 = pneg %p81
        %p385 = pneg %p105
        %p386 = pneg %p102
        %p387 = pneg %p126
        %p388 = pneg %p123
        %p389 = pneg %p147
        %p390 = pneg %p144
        %p391 = pneg %p168
        %p392 = pneg %p165
        %p393 = pneg %p189
        %p394 = pneg %p186
        %p395 = pneg %p210
        %p396 = pneg %p207
        %p397 = pneg %p231
        %p398 = pneg %p228
        %p399 = pneg %p257
        %p400 = pneg %p254
        %p401 = scmp.lt.s32.totalorder %s21, 1
        %s402 = scalar_select %p401, %s21, 1
        %s403 = smul.addr %s402, 8
        %s404 = scalar_lea.vmem %s10, %s403
        %p405 = scmp.lt.s32.totalorder %s21, 1
        %s406 = scalar_select %p405, %s21, 1
        %s407 = smul.addr %s406, 8
        %s408 = scalar_lea.vmem %s10, %s407
        %v410 = vld [vmem:[%s371] sm:$0xff]
        %v411 = vld [vmem:[%s371 + $0x8] sm:$0xff]
        %v412 = vld [vmem:[%s371 + $0x10] sm:$0xff]
        %v413 = vld [vmem:[%s371 + $0x18] sm:$0xff]
        %v414 = vld [vmem:[%s371 + $0x20] sm:$0xff]
        %v415 = vpack.c.bf16 %v412, %v412
        %v416 = vld [vmem:[%s1] sm:$0xf]
        %v417 = vld [vmem:[%s1 + $0x4] sm:$0xf]
        %v418 = vld [vmem:[%s1 + $0x8] sm:$0xf]
        %v419 = vld [vmem:[%s1 + $0xc] sm:$0xf]
        %v420 = vld [vmem:[%s1 + $0x10] sm:$0xf]
        %v421 = vld [vmem:[%s1 + $0x14] sm:$0xf]
        %v422 = vld [vmem:[%s1 + $0x18] sm:$0xf]
        %v423 = vld [vmem:[%s1 + $0x1c] sm:$0xf]
        %v424 = vld [vmem:[%s1 + $0x20] sm:$0xf]
        %v425 = vld [vmem:[%s1 + $0x24] sm:$0xf]
        %v426 = vld [vmem:[%s1 + $0x28] sm:$0xf]
        %v427 = vld [vmem:[%s1 + $0x2c] sm:$0xf]
        %v428 = vld [vmem:[%s1 + $0x30] sm:$0xf]
        %v429 = vld [vmem:[%s1 + $0x34] sm:$0xf]
        %v430 = vld [vmem:[%s1 + $0x38] sm:$0xf]
        %v431 = vld [vmem:[%s1 + $0x3c] sm:$0xf]
        %v432 = vld [vmem:[%s2] sm:$0x1]
        %v434 = vlaneseq
        %v435 = vshrl.u32 %v434, 7
        %v436 = vsub.s32 0, %v435
        %v437 = vrot.slane %v432, %v436
        %v455 = vunpack.c.l.b16 %v416
        %v456 = vunpack.c.l.b16 %v417
        %v457 = vunpack.c.l.b16 %v418
        %v458 = vunpack.c.l.b16 %v419
        %v459 = vunpack.c.l.b16 %v420
        %v460 = vunpack.c.l.b16 %v421
        %v461 = vunpack.c.l.b16 %v422
        %v462 = vunpack.c.l.b16 %v423
        %v463 = vunpack.c.l.b16 %v424
        %v464 = vunpack.c.l.b16 %v425
        %v465 = vunpack.c.l.b16 %v426
        %v466 = vunpack.c.l.b16 %v427
        %v467 = vunpack.c.l.b16 %v428
        %v468 = vunpack.c.l.b16 %v429
        %v469 = vunpack.c.l.b16 %v430
        %v470 = vunpack.c.l.b16 %v431
        %v471 = vpack.c.b16 %v456, %v455
        %v472 = vpack.c.b16 %v458, %v457
        %v473 = vpack.c.b16 %v460, %v459
        %v474 = vpack.c.b16 %v462, %v461
        %v475 = vpack.c.b16 %v464, %v463
        %v476 = vpack.c.b16 %v466, %v465
        %v477 = vpack.c.b16 %v468, %v467
        %v478 = vpack.c.b16 %v470, %v469
        %487 = vmatprep.subr.bf16.mxu0 0
        %488 = vmatpush1.bf16.msra.mxu0 %v478
        %489 = vmatprep.subr.bf16.mxu0 0
        %490 = vmatpush1.bf16.msra.mxu0 %v477
        %491 = vmatprep.subr.bf16.mxu0 0
        %492 = vmatpush1.bf16.msra.mxu0 %v476
        %493 = vmatprep.subr.bf16.mxu0 0
        %494 = vmatpush1.bf16.msra.mxu0 %v475
        %495 = vmatprep.subr.bf16.mxu0 0
        %496 = vmatpush1.bf16.msra.mxu0 %v474
        %497 = vmatprep.subr.bf16.mxu0 0
        %498 = vmatpush1.bf16.msra.mxu0 %v473
        %499 = vmatprep.subr.bf16.mxu0 0
        %500 = vmatpush1.bf16.msra.mxu0 %v472
        %501 = vmatprep.subr.bf16.mxu0 0
        %502 = vmatpush1.bf16.msra.mxu0 %v471
        %503 = vmatprep.subr.bf16.mxu0 0
        %504 = vmatpush2.bf16.msra.mxu0 0
        %505 = vmatprep.subr.bf16.mxu0 0
        %506 = vmatpush2.bf16.msra.mxu0 0
        %507 = vmatprep.subr.bf16.mxu0 0
        %508 = vmatpush2.bf16.msra.mxu0 0
        %509 = vmatprep.subr.bf16.mxu0 0
        %510 = vmatpush2.bf16.msra.mxu0 0
        %511 = vmatprep.subr.bf16.mxu0 0
        %512 = vmatpush2.bf16.msra.mxu0 0
        %513 = vmatprep.subr.bf16.mxu0 0
        %514 = vmatpush2.bf16.msra.mxu0 0
        %515 = vmatprep.subr.bf16.mxu0 0
        %516 = vmatpush2.bf16.msra.mxu0 0
        %517 = vmatprep.subr.bf16.mxu0 0
        %518 = vmatpush2.bf16.msra.mxu0 0
        %519 = vmatprep.mubr.bf16.mxu0 0
        %520 = vmatmul.mubr.bf16.gmra.mxu0 %v415
        %v521 = vpop.f32.mrf.mxu0
        %v522 = vadd.f32 %v437, %v521
        %v523 = vpop.f32.mrf.mxu0
        %v524 = vpop.f32.mrf.mxu0
        %v525 = vpop.f32.mrf.mxu0
        %526 = vdwg.mxu0
        %v527 = vpack.c.bf16 %v411, %v410
        %v528 = vpack.c.bf16 %v413, %v412
        %v529 = vpack.c.bf16 %v414, %v414
        %v530 = vld [vmem:[%s3] sm:$0xff]
        %v531 = vld [vmem:[%s3 + $0x8] sm:$0xff]
        %v532 = vld [vmem:[%s3 + $0x10] sm:$0xff]
        %v533 = vld [vmem:[%s3 + $0x18] sm:$0xff]
        %v534 = vld [vmem:[%s3 + $0x20] sm:$0xff]
        %v535 = vld [vmem:[%s3 + $0x28] sm:$0xff]
        %v536 = vld [vmem:[%s3 + $0x30] sm:$0xff]
        %v537 = vld [vmem:[%s3 + $0x38] sm:$0xff]
        %v538 = vld [vmem:[%s3 + $0x40] sm:$0xff]
        %v539 = vld [vmem:[%s3 + $0x48] sm:$0xff]
        %v540 = vld [vmem:[%s3 + $0x50] sm:$0xff]
        %v541 = vld [vmem:[%s3 + $0x58] sm:$0xff]
        %v542 = vld [vmem:[%s3 + $0x60] sm:$0xff]
        %v543 = vld [vmem:[%s3 + $0x68] sm:$0xff]
        %v544 = vld [vmem:[%s3 + $0x70] sm:$0xff]
        %v545 = vld [vmem:[%s3 + $0x78] sm:$0xff]
        %v546 = vld [vmem:[%s4] sm:$0x3]
        %v548 = vlaneseq
        %v549 = vshrl.u32 %v548, 7
        %v550 = vsub.s32 0, %v549
        %v551 = vrot.slane %v546, %v550
        %v552 = vlaneseq
        %v553 = vshrl.u32 %v552, 7
        %v554 = vsub.s32 1, %v553
        %v555 = vrot.slane %v546, %v554
        %v574 = vunpack.c.l.b16 %v530
        %v575 = vunpack.c.h.b16 %v530
        %v576 = vunpack.c.l.b16 %v531
        %v577 = vunpack.c.h.b16 %v531
        %v578 = vunpack.c.l.b16 %v532
        %v579 = vunpack.c.h.b16 %v532
        %v580 = vunpack.c.l.b16 %v533
        %v581 = vunpack.c.h.b16 %v533
        %v582 = vunpack.c.l.b16 %v534
        %v583 = vunpack.c.h.b16 %v534
        %v584 = vunpack.c.l.b16 %v535
        %v585 = vunpack.c.h.b16 %v535
        %v586 = vunpack.c.l.b16 %v536
        %v587 = vunpack.c.h.b16 %v536
        %v588 = vunpack.c.l.b16 %v537
        %v589 = vunpack.c.h.b16 %v537
        %v590 = vunpack.c.l.b16 %v538
        %v591 = vunpack.c.h.b16 %v538
        %v592 = vunpack.c.l.b16 %v539
        %v593 = vunpack.c.h.b16 %v539
        %v594 = vunpack.c.l.b16 %v540
        %v595 = vunpack.c.h.b16 %v540
        %v596 = vunpack.c.l.b16 %v541
        %v597 = vunpack.c.h.b16 %v541
        %v598 = vunpack.c.l.b16 %v542
        %v599 = vunpack.c.h.b16 %v542
        %v600 = vunpack.c.l.b16 %v543
        %v601 = vunpack.c.h.b16 %v543
        %v602 = vunpack.c.l.b16 %v544
        %v603 = vunpack.c.h.b16 %v544
        %v604 = vunpack.c.l.b16 %v545
        %v605 = vunpack.c.h.b16 %v545
        %v606 = vpack.c.b16 %v576, %v574
        %v607 = vpack.c.b16 %v577, %v575
        %v608 = vpack.c.b16 %v580, %v578
        %v609 = vpack.c.b16 %v581, %v579
        %v610 = vpack.c.b16 %v584, %v582
        %v611 = vpack.c.b16 %v585, %v583
        %v612 = vpack.c.b16 %v588, %v586
        %v613 = vpack.c.b16 %v589, %v587
        %v614 = vpack.c.b16 %v592, %v590
        %v615 = vpack.c.b16 %v593, %v591
        %v616 = vpack.c.b16 %v596, %v594
        %v617 = vpack.c.b16 %v597, %v595
        %v618 = vpack.c.b16 %v600, %v598
        %v619 = vpack.c.b16 %v601, %v599
        %v620 = vpack.c.b16 %v604, %v602
        %v621 = vpack.c.b16 %v605, %v603
        %638 = vmatprep.subr.bf16.mxu0 %v621
        %639 = vmatpush1.bf16.msra.mxu0 %v620
        %640 = vmatprep.subr.bf16.mxu0 %v619
        %641 = vmatpush1.bf16.msra.mxu0 %v618
        %642 = vmatprep.subr.bf16.mxu0 %v617
        %643 = vmatpush1.bf16.msra.mxu0 %v616
        %644 = vmatprep.subr.bf16.mxu0 %v615
        %645 = vmatpush1.bf16.msra.mxu0 %v614
        %646 = vmatprep.subr.bf16.mxu0 %v613
        %647 = vmatpush1.bf16.msra.mxu0 %v612
        %648 = vmatprep.subr.bf16.mxu0 %v611
        %649 = vmatpush1.bf16.msra.mxu0 %v610
        %650 = vmatprep.subr.bf16.mxu0 %v609
        %651 = vmatpush1.bf16.msra.mxu0 %v608
        %652 = vmatprep.subr.bf16.mxu0 %v607
        %653 = vmatpush1.bf16.msra.mxu0 %v606
        %654 = vmatprep.subr.bf16.mxu0 0
        %655 = vmatpush2.bf16.msra.mxu0 0
        %656 = vmatprep.subr.bf16.mxu0 0
        %657 = vmatpush2.bf16.msra.mxu0 0
        %658 = vmatprep.subr.bf16.mxu0 0
        %659 = vmatpush2.bf16.msra.mxu0 0
        %660 = vmatprep.subr.bf16.mxu0 0
        %661 = vmatpush2.bf16.msra.mxu0 0
        %662 = vmatprep.subr.bf16.mxu0 0
        %663 = vmatpush2.bf16.msra.mxu0 0
        %664 = vmatprep.subr.bf16.mxu0 0
        %665 = vmatpush2.bf16.msra.mxu0 0
        %666 = vmatprep.subr.bf16.mxu0 0
        %667 = vmatpush2.bf16.msra.mxu0 0
        %668 = vmatprep.subr.bf16.mxu0 0
        %669 = vmatpush2.bf16.msra.mxu0 0
        %670 = vmatprep.mubr.bf16.mxu0 0
        %671 = vmatmul.mubr.bf16.gmra.mxu0 %v527
        %v672 = vpop.f32.mrf.mxu0
        %v673 = vadd.f32 %v551, %v672
        %v674 = vpop.f32.mrf.mxu0
        %v675 = vadd.f32 %v555, %v674
        %v676 = vpop.f32.mrf.mxu0
        %v677 = vadd.f32 %v551, %v676
        %v678 = vpop.f32.mrf.mxu0
        %v679 = vadd.f32 %v555, %v678
        %680 = vmatprep.mubr.bf16.mxu0 0
        %681 = vmatmul.mubr.bf16.gmra.mxu0 %v528
        %v682 = vpop.f32.mrf.mxu0
        %v683 = vadd.f32 %v551, %v682
        %v684 = vpop.f32.mrf.mxu0
        %v685 = vadd.f32 %v555, %v684
        %v686 = vpop.f32.mrf.mxu0
        %v687 = vadd.f32 %v551, %v686
        %v688 = vpop.f32.mrf.mxu0
        %v689 = vadd.f32 %v555, %v688
        %690 = vmatprep.mubr.bf16.mxu0 0
        %691 = vmatmul.mubr.bf16.gmra.mxu0 %v529
        %v692 = vpop.f32.mrf.mxu0
        %v693 = vadd.f32 %v551, %v692
        %v694 = vpop.f32.mrf.mxu0
        %v695 = vadd.f32 %v555, %v694
        %v696 = vpop.f32.mrf.mxu0
        %v697 = vpop.f32.mrf.mxu0
        %698 = vdwg.mxu0
        %v699 = vmul.f32 %v673, %v522
        %v700 = vmul.f32 %v677, %v522
        %v701 = vmul.f32 %v683, %v522
        %v702 = vmul.f32 %v687, %v522
        %v703 = vmul.f32 %v693, %v522
        %v704 = vpack.c.bf16 %v700, %v699
        %v705 = vpack.c.bf16 %v702, %v701
        %v706 = vpack.c.bf16 %v703, %v703
        %v707 = vld [vmem:[%s7] sm:$0xf]
        %v708 = vld [vmem:[%s7 + $0x4] sm:$0xf]
        %v709 = vld [vmem:[%s7 + $0x8] sm:$0xf]
        %v710 = vld [vmem:[%s7 + $0xc] sm:$0xf]
        %v711 = vld [vmem:[%s7 + $0x10] sm:$0xf]
        %v712 = vld [vmem:[%s7 + $0x14] sm:$0xf]
        %v713 = vld [vmem:[%s7 + $0x18] sm:$0xf]
        %v714 = vld [vmem:[%s7 + $0x1c] sm:$0xf]
        %v715 = vld [vmem:[%s7 + $0x20] sm:$0xf]
        %v716 = vld [vmem:[%s7 + $0x24] sm:$0xf]
        %v717 = vld [vmem:[%s7 + $0x28] sm:$0xf]
        %v718 = vld [vmem:[%s7 + $0x2c] sm:$0xf]
        %v719 = vld [vmem:[%s7 + $0x30] sm:$0xf]
        %v720 = vld [vmem:[%s7 + $0x34] sm:$0xf]
        %v721 = vld [vmem:[%s7 + $0x38] sm:$0xf]
        %v722 = vld [vmem:[%s7 + $0x3c] sm:$0xf]
        %v739 = vunpack.c.l.b16 %v707
        %v740 = vunpack.c.l.b16 %v708
        %v741 = vunpack.c.l.b16 %v709
        %v742 = vunpack.c.l.b16 %v710
        %v743 = vunpack.c.l.b16 %v711
        %v744 = vunpack.c.l.b16 %v712
        %v745 = vunpack.c.l.b16 %v713
        %v746 = vunpack.c.l.b16 %v714
        %v747 = vunpack.c.l.b16 %v715
        %v748 = vunpack.c.l.b16 %v716
        %v749 = vunpack.c.l.b16 %v717
        %v750 = vunpack.c.l.b16 %v718
        %v751 = vunpack.c.l.b16 %v719
        %v752 = vunpack.c.l.b16 %v720
        %v753 = vunpack.c.l.b16 %v721
        %v754 = vunpack.c.l.b16 %v722
        %v755 = vpack.c.b16 %v740, %v739
        %v756 = vpack.c.b16 %v742, %v741
        %v757 = vpack.c.b16 %v744, %v743
        %v758 = vpack.c.b16 %v746, %v745
        %v759 = vpack.c.b16 %v748, %v747
        %v760 = vpack.c.b16 %v750, %v749
        %v761 = vpack.c.b16 %v752, %v751
        %v762 = vpack.c.b16 %v754, %v753
        %771 = vmatprep.subr.bf16.mxu0 0
        %772 = vmatpush1.bf16.msra.mxu0 %v762
        %773 = vmatprep.subr.bf16.mxu0 0
        %774 = vmatpush1.bf16.msra.mxu0 %v761
        %775 = vmatprep.subr.bf16.mxu0 0
        %776 = vmatpush1.bf16.msra.mxu0 %v760
        %777 = vmatprep.subr.bf16.mxu0 0
        %778 = vmatpush1.bf16.msra.mxu0 %v759
        %779 = vmatprep.subr.bf16.mxu0 0
        %780 = vmatpush1.bf16.msra.mxu0 %v758
        %781 = vmatprep.subr.bf16.mxu0 0
        %782 = vmatpush1.bf16.msra.mxu0 %v757
        %783 = vmatprep.subr.bf16.mxu0 0
        %784 = vmatpush1.bf16.msra.mxu0 %v756
        %785 = vmatprep.subr.bf16.mxu0 0
        %786 = vmatpush1.bf16.msra.mxu0 %v755
        %787 = vmatprep.subr.bf16.mxu0 0
        %788 = vmatpush2.bf16.msra.mxu0 0
        %789 = vmatprep.subr.bf16.mxu0 0
        %790 = vmatpush2.bf16.msra.mxu0 0
        %791 = vmatprep.subr.bf16.mxu0 0
        %792 = vmatpush2.bf16.msra.mxu0 0
        %793 = vmatprep.subr.bf16.mxu0 0
        %794 = vmatpush2.bf16.msra.mxu0 0
        %795 = vmatprep.subr.bf16.mxu0 0
        %796 = vmatpush2.bf16.msra.mxu0 0
        %797 = vmatprep.subr.bf16.mxu0 0
        %798 = vmatpush2.bf16.msra.mxu0 0
        %799 = vmatprep.subr.bf16.mxu0 0
        %800 = vmatpush2.bf16.msra.mxu0 0
        %801 = vmatprep.subr.bf16.mxu0 0
        %802 = vmatpush2.bf16.msra.mxu0 0
        %803 = vmatprep.mubr.bf16.mxu0 0
        %804 = vmatmul.mubr.bf16.gmra.mxu0 %v704
        %v805 = vpop.f32.mrf.mxu0
        %v806 = vadd.f32 0.0, %v805
        %v807 = vpop.f32.mrf.mxu0
        %v808 = vpop.f32.mrf.mxu0
        %v809 = vadd.f32 0.0, %v808
        %v810 = vpop.f32.mrf.mxu0
        %811 = vmatprep.mubr.bf16.mxu0 0
        %812 = vmatmul.mubr.bf16.gmra.mxu0 %v705
        %v813 = vpop.f32.mrf.mxu0
        %v814 = vadd.f32 0.0, %v813
        %v815 = vpop.f32.mrf.mxu0
        %v816 = vpop.f32.mrf.mxu0
        %v817 = vadd.f32 0.0, %v816
        %v818 = vpop.f32.mrf.mxu0
        %819 = vmatprep.mubr.bf16.mxu0 0
        %820 = vmatmul.mubr.bf16.gmra.mxu0 %v706
        %v821 = vpop.f32.mrf.mxu0
        %v822 = vadd.f32 0.0, %v821
        %v823 = vpop.f32.mrf.mxu0
        %v824 = vpop.f32.mrf.mxu0
        %v825 = vpop.f32.mrf.mxu0
        %826 = vdwg.mxu0
        %v827 = vmul.f32 %v806, 0.25
        %v828 = vmul.f32 %v809, 0.25
        %v829 = vmul.f32 %v814, 0.25
        %v830 = vmul.f32 %v817, 0.25
        %v831 = vmul.f32 %v822, 0.25
        %v832 = vmax.f32 %v827, %v831
        %v833 = vmax.f32 %v832, %v828
        %v834 = vmax.f32 %v829, %v830
        %v835 = vmax.f32 %v833, %v834
        %v836 = vsub.f32 %v827, %v835
        %v837 = vsub.f32 %v828, %v835
        %v838 = vsub.f32 %v829, %v835
        %v839 = vsub.f32 %v830, %v835
        %v840 = vsub.f32 %v831, %v835
        %v841 = vmul.f32 %v836, 1.442695
        %v842 = vpow.pop %v841
        %v843 = vmul.f32 %v837, 1.442695
        %v844 = vpow.pop %v843
        %v845 = vmul.f32 %v838, 1.442695
        %v846 = vpow.pop %v845
        %v847 = vmul.f32 %v839, 1.442695
        %v848 = vpow.pop %v847
        %v849 = vmul.f32 %v840, 1.442695
        %v850 = vpow.pop %v849
        %v851 = vadd.f32 %v842, %v844
        %v852 = vadd.f32 %v851, %v846
        %v853 = vadd.f32 %v852, %v848
        %v854 = vadd.f32 %v853, %v850
        %v855 = vrcp.pop %v854
        %v856 = vmul.f32 %v842, %v675
        %v857 = vmul.f32 %v844, %v679
        %v858 = vmul.f32 %v846, %v685
        %v859 = vmul.f32 %v848, %v689
        %v860 = vmul.f32 %v850, %v695
        %v861 = vadd.f32 %v856, %v857
        %v862 = vadd.f32 %v861, %v858
        %v863 = vadd.f32 %v862, %v859
        %v864 = vadd.f32 %v863, %v860
        %v865 = vmul.f32 %v864, %v855
        %v866 = vpack.c.bf16 %v865, %v865
        %v867 = vld [vmem:[%s5] sm:$0xf]
        %v868 = vld [vmem:[%s5 + $0x4] sm:$0xf]
        %v869 = vld [vmem:[%s5 + $0x8] sm:$0xf]
        %v870 = vld [vmem:[%s5 + $0xc] sm:$0xf]
        %v871 = vld [vmem:[%s5 + $0x10] sm:$0xf]
        %v872 = vld [vmem:[%s5 + $0x14] sm:$0xf]
        %v873 = vld [vmem:[%s5 + $0x18] sm:$0xf]
        %v874 = vld [vmem:[%s5 + $0x1c] sm:$0xf]
        %v875 = vld [vmem:[%s5 + $0x20] sm:$0xf]
        %v876 = vld [vmem:[%s5 + $0x24] sm:$0xf]
        %v877 = vld [vmem:[%s5 + $0x28] sm:$0xf]
        %v878 = vld [vmem:[%s5 + $0x2c] sm:$0xf]
        %v879 = vld [vmem:[%s5 + $0x30] sm:$0xf]
        %v880 = vld [vmem:[%s5 + $0x34] sm:$0xf]
        %v881 = vld [vmem:[%s5 + $0x38] sm:$0xf]
        %v882 = vld [vmem:[%s5 + $0x3c] sm:$0xf]
        %v883 = vld [vmem:[%s6] sm:$0x1]
        %v885 = vlaneseq
        %v886 = vshrl.u32 %v885, 7
        %v887 = vsub.s32 0, %v886
        %v888 = vrot.slane %v883, %v887
        %v906 = vunpack.c.l.b16 %v867
        %v907 = vunpack.c.l.b16 %v868
        %v908 = vunpack.c.l.b16 %v869
        %v909 = vunpack.c.l.b16 %v870
        %v910 = vunpack.c.l.b16 %v871
        %v911 = vunpack.c.l.b16 %v872
        %v912 = vunpack.c.l.b16 %v873
        %v913 = vunpack.c.l.b16 %v874
        %v914 = vunpack.c.l.b16 %v875
        %v915 = vunpack.c.l.b16 %v876
        %v916 = vunpack.c.l.b16 %v877
        %v917 = vunpack.c.l.b16 %v878
        %v918 = vunpack.c.l.b16 %v879
        %v919 = vunpack.c.l.b16 %v880
        %v920 = vunpack.c.l.b16 %v881
        %v921 = vunpack.c.l.b16 %v882
        %v922 = vpack.c.b16 %v907, %v906
        %v923 = vpack.c.b16 %v909, %v908
        %v924 = vpack.c.b16 %v911, %v910
        %v925 = vpack.c.b16 %v913, %v912
        %v926 = vpack.c.b16 %v915, %v914
        %v927 = vpack.c.b16 %v917, %v916
        %v928 = vpack.c.b16 %v919, %v918
        %v929 = vpack.c.b16 %v921, %v920
        %938 = vmatprep.subr.bf16.mxu0 0
        %939 = vmatpush1.bf16.msra.mxu0 %v929
        %940 = vmatprep.subr.bf16.mxu0 0
        %941 = vmatpush1.bf16.msra.mxu0 %v928
        %942 = vmatprep.subr.bf16.mxu0 0
        %943 = vmatpush1.bf16.msra.mxu0 %v927
        %944 = vmatprep.subr.bf16.mxu0 0
        %945 = vmatpush1.bf16.msra.mxu0 %v926
        %946 = vmatprep.subr.bf16.mxu0 0
        %947 = vmatpush1.bf16.msra.mxu0 %v925
        %948 = vmatprep.subr.bf16.mxu0 0
        %949 = vmatpush1.bf16.msra.mxu0 %v924
        %950 = vmatprep.subr.bf16.mxu0 0
        %951 = vmatpush1.bf16.msra.mxu0 %v923
        %952 = vmatprep.subr.bf16.mxu0 0
        %953 = vmatpush1.bf16.msra.mxu0 %v922
        %954 = vmatprep.subr.bf16.mxu0 0
        %955 = vmatpush2.bf16.msra.mxu0 0
        %956 = vmatprep.subr.bf16.mxu0 0
        %957 = vmatpush2.bf16.msra.mxu0 0
        %958 = vmatprep.subr.bf16.mxu0 0
        %959 = vmatpush2.bf16.msra.mxu0 0
        %960 = vmatprep.subr.bf16.mxu0 0
        %961 = vmatpush2.bf16.msra.mxu0 0
        %962 = vmatprep.subr.bf16.mxu0 0
        %963 = vmatpush2.bf16.msra.mxu0 0
        %964 = vmatprep.subr.bf16.mxu0 0
        %965 = vmatpush2.bf16.msra.mxu0 0
        %966 = vmatprep.subr.bf16.mxu0 0
        %967 = vmatpush2.bf16.msra.mxu0 0
        %968 = vmatprep.subr.bf16.mxu0 0
        %969 = vmatpush2.bf16.msra.mxu0 0
        %970 = vmatprep.mubr.bf16.mxu0 0
        %971 = vmatmul.mubr.bf16.gmra.mxu0 %v866
        %v972 = vpop.f32.mrf.mxu0
        %v973 = vadd.f32 %v888, %v972
        %v974 = vpop.f32.mrf.mxu0
        %v975 = vpop.f32.mrf.mxu0
        %v976 = vpop.f32.mrf.mxu0
        %977 = vdwg.mxu0
        %v978 = vmax.f32 %v973, 0.0
        %v979 = vld [vmem:[%s8] sm:$0x1]
        %v980 = vld [vmem:[%s9] sm:$0x1]
        %981 = vadd.xlane.f32.xlu0 %v978
        %v982 = vpop.xlane.xlu0 %981
        %v983 = vrcp.pop 128.0
        %v984 = vmul.f32 %v982, %v983
        %v985 = vsub.f32 %v978, %v984
        %v986 = vmul.f32 %v985, %v985
        %987 = vadd.xlane.f32.xlu0 %v986
        %v988 = vpop.xlane.xlu0 %987
        %v989 = vrcp.pop 127.0
        %v990 = vmul.f32 %v988, %v989
        %v991 = vrsqrt.pop %v990
        %v992 = vmul.f32 %v990, %v991
        %vm993 = vcmp.eq.f32.partialorder %v990, inf
        %v994 = vsel %vm993, %v990, %v992
        %vm995 = vcmp.eq.f32.partialorder %v990, 0.0
        %v996 = vand.u32 %v990, 2147483648
        %v997 = vsel %vm995, %v996, %v994
        %v999 = vlaneseq
        %v1000 = vshrl.u32 %v999, 7
        %v1001 = vsub.s32 0, %v1000
        %v1002 = vrot.slane %v979, %v1001
        %v1004 = vmul.f32 %v1002, %v985
        %v1005 = vadd.f32 %v997, 1e-06
        %v1006 = vrcp.pop %v1005
        %v1007 = vmul.f32 %v1004, %v1006
        %v1009 = vlaneseq
        %v1010 = vshrl.u32 %v1009, 7
        %v1011 = vsub.s32 0, %v1010
        %v1012 = vrot.slane %v980, %v1011
        %v1014 = vadd.f32 %v1007, %v1012
        %1015 = vst [vmem:[%s408] sm:$0xff] %v1014
        %p1016 = scmp.lt.s32.totalorder %s21, 1
        %s1017 = scalar_select %p1016, %s21, 1
        %s1018 = smul.addr %s1017, 8
        %s1019 = scalar_lea.vmem %s10, %s1018
        // Predicated region
        $region99: #{graph_transformer_forward.10} parent=93 // pred_check
          %p1020 = pneg %p254
        $region100: #{graph_transformer_forward.10} parent=93 // pred_check_branch
          %1022 = sbr.rel (%p1020) target = $region102
        $region101: #{graph_transformer_forward.10} parent=93 // pred_region
          _
        $region102: #{graph_transformer_forward.10} parent=93 // pred_fallthru
          _
      $region94: #{graph_transformer_forward.10} parent=5 // pred_fallthru
        _
      %p1023 = scmp.le.s32.totalorder 2, %s16
      // Predicated region
      $region103: #{graph_transformer_forward.10} parent=5 // pred_check
        %p1024 = pneg %p1023
      $region104: #{graph_transformer_forward.10} parent=5 // pred_check_branch
        %1026 = sbr.rel (%p1024) target = $region106
      $region105: #{graph_transformer_forward.10} parent=5 // pred_region
        %s1027 = ssub.s32 %s16, 2
        // Predicated region
        $region107: #{graph_transformer_forward.10} parent=105 // pred_check
          %p1028 = pneg %p260
        $region108: #{graph_transformer_forward.10} parent=105 // pred_check_branch
          %1030 = sbr.rel (%p1028) target = $region110
        $region109: #{graph_transformer_forward.10} parent=105 // pred_region
          %p1031 = scmp.lt.s32.totalorder %s22, 1
          %s1032 = scalar_select %p1031, %s22, 1
          %s1033 = smul.addr %s1032, 8
          %s1034 = scalar_lea.vmem %s10, %s1033
        $region110: #{graph_transformer_forward.10} parent=105 // pred_fallthru
          _
      $region106: #{graph_transformer_forward.10} parent=5 // pred_fallthru
        _
    $region6: #{graph_transformer_forward.10} parent=1 // loop_footer
      %s20 = sadd.s32 1, %s16
    $region7: #{graph_transformer_forward.10} parent=1 // loop_footer_branch
      %15 = sbr.rel target = $region3
    $region8: #{graph_transformer_forward.10} parent=1 // loop_exit
      _

// kernel: graph_transformer_forward.11
$region0: #{graph_transformer_forward.11}
  #allocation0 [shape = 'u32[]', space=smem, size = 0x4, offset = 0x4, fixed_abs, tag = 'smem constant byte address 0x4 - core index']
  #allocation1 [shape = 'u32[144,128]{1,0:T(1,128)}', space=vmem, size = 0x12000, scoped, tag = 'internal scratch']
  %s0 = inlined_call_operand.vmem [shape: f32[8,128], index: 0, kind: input, shape index: {}]
  %s1 = inlined_call_operand.vmem [shape: f32[8,8,128], index: 1, kind: input, shape index: {}]
  %s2 = inlined_call_operand.vmem [shape: bf16[128,128], index: 2, kind: input, shape index: {}]
  %s3 = inlined_call_operand.vmem [shape: f32[1,128], index: 3, kind: input, shape index: {}]
  %s4 = inlined_call_operand.vmem [shape: bf16[128,256], index: 4, kind: input, shape index: {}]
  %s5 = inlined_call_operand.vmem [shape: f32[1,256], index: 5, kind: input, shape index: {}]
  %s6 = inlined_call_operand.vmem [shape: bf16[128,128], index: 6, kind: input, shape index: {}]
  %s7 = inlined_call_operand.vmem [shape: f32[1,128], index: 7, kind: input, shape index: {}]
  %s8 = inlined_call_operand.vmem [shape: bf16[128,128], index: 8, kind: input, shape index: {}]
  %s9 = inlined_call_operand.vmem [shape: f32[1,128], index: 9, kind: input, shape index: {}]
  %s10 = inlined_call_operand.vmem [shape: f32[1,128], index: 10, kind: input, shape index: {}]
  %s11 = inlined_call_operand.vmem [shape: f32[8,128], index: 11, kind: output, shape index: {}]
  %s12 = sld [smem:[#allocation0]]
  $region54: #{graph_transformer_forward.11} parent=0
    _
  %s14 = ssub.s32 1, %s12
  %s15 = scalar_select 0, %s14, %s12
  // Predicated region
  $region2: #{graph_transformer_forward.11} parent=0 // pred_check
    _
  $region3: #{graph_transformer_forward.11} parent=0 // pred_check_branch
    %17 = sbr.rel (0) target = $region5
  $region4: #{graph_transformer_forward.11} parent=0 // pred_region
    _
  $region5: #{graph_transformer_forward.11} parent=0 // pred_fallthru
    _
  // Predicated region
  $region6: #{graph_transformer_forward.11} parent=0 // pred_check
    _
  $region7: #{graph_transformer_forward.11} parent=0 // pred_check_branch
    %19 = sbr.rel (0) target = $region9
  $region8: #{graph_transformer_forward.11} parent=0 // pred_region
    _
  $region9: #{graph_transformer_forward.11} parent=0 // pred_fallthru
    _
  // Predicated region
  $region10: #{graph_transformer_forward.11} parent=0 // pred_check
    _
  $region11: #{graph_transformer_forward.11} parent=0 // pred_check_branch
    %21 = sbr.rel (0) target = $region13
  $region12: #{graph_transformer_forward.11} parent=0 // pred_region
    _
  $region13: #{graph_transformer_forward.11} parent=0 // pred_fallthru
    _
  // Predicated region
  $region14: #{graph_transformer_forward.11} parent=0 // pred_check
    _
  $region15: #{graph_transformer_forward.11} parent=0 // pred_check_branch
    %23 = sbr.rel (0) target = $region17
  $region16: #{graph_transformer_forward.11} parent=0 // pred_region
    _
  $region17: #{graph_transformer_forward.11} parent=0 // pred_fallthru
    _
  // Predicated region
  $region18: #{graph_transformer_forward.11} parent=0 // pred_check
    _
  $region19: #{graph_transformer_forward.11} parent=0 // pred_check_branch
    %25 = sbr.rel (0) target = $region21
  $region20: #{graph_transformer_forward.11} parent=0 // pred_region
    _
  $region21: #{graph_transformer_forward.11} parent=0 // pred_fallthru
    _
  // Predicated region
  $region22: #{graph_transformer_forward.11} parent=0 // pred_check
    _
  $region23: #{graph_transformer_forward.11} parent=0 // pred_check_branch
    %27 = sbr.rel (0) target = $region25
  $region24: #{graph_transformer_forward.11} parent=0 // pred_region
    _
  $region25: #{graph_transformer_forward.11} parent=0 // pred_fallthru
    _
  // Predicated region
  $region26: #{graph_transformer_forward.11} parent=0 // pred_check
    _
  $region27: #{graph_transformer_forward.11} parent=0 // pred_check_branch
    %29 = sbr.rel (0) target = $region29
  $region28: #{graph_transformer_forward.11} parent=0 // pred_region
    _
  $region29: #{graph_transformer_forward.11} parent=0 // pred_fallthru
    _
  // Predicated region
  $region30: #{graph_transformer_forward.11} parent=0 // pred_check
    _
  $region31: #{graph_transformer_forward.11} parent=0 // pred_check_branch
    %31 = sbr.rel (0) target = $region33
  $region32: #{graph_transformer_forward.11} parent=0 // pred_region
    _
  $region33: #{graph_transformer_forward.11} parent=0 // pred_fallthru
    _
  // Predicated region
  $region34: #{graph_transformer_forward.11} parent=0 // pred_check
    _
  $region35: #{graph_transformer_forward.11} parent=0 // pred_check_branch
    %33 = sbr.rel (0) target = $region37
  $region36: #{graph_transformer_forward.11} parent=0 // pred_region
    _
  $region37: #{graph_transformer_forward.11} parent=0 // pred_fallthru
    _
  // Predicated region
  $region38: #{graph_transformer_forward.11} parent=0 // pred_check
    _
  $region39: #{graph_transformer_forward.11} parent=0 // pred_check_branch
    %35 = sbr.rel (0) target = $region41
  $region40: #{graph_transformer_forward.11} parent=0 // pred_region
    _
  $region41: #{graph_transformer_forward.11} parent=0 // pred_fallthru
    _
  // Predicated region
  $region42: #{graph_transformer_forward.11} parent=0 // pred_check
    _
  $region43: #{graph_transformer_forward.11} parent=0 // pred_check_branch
    %37 = sbr.rel (0) target = $region45
  $region44: #{graph_transformer_forward.11} parent=0 // pred_region
    _
  $region45: #{graph_transformer_forward.11} parent=0 // pred_fallthru
    _
  %v39 = vld [vmem:[%s0] sm:$0xff]
  %v40 = vpack.c.bf16 %v39, %v39
  %v41 = vld [vmem:[%s2] sm:$0xf]
  %v42 = vld [vmem:[%s2 + $0x4] sm:$0xf]
  %v43 = vld [vmem:[%s2 + $0x8] sm:$0xf]
  %v44 = vld [vmem:[%s2 + $0xc] sm:$0xf]
  %v45 = vld [vmem:[%s2 + $0x10] sm:$0xf]
  %v46 = vld [vmem:[%s2 + $0x14] sm:$0xf]
  %v47 = vld [vmem:[%s2 + $0x18] sm:$0xf]
  %v48 = vld [vmem:[%s2 + $0x1c] sm:$0xf]
  %v49 = vld [vmem:[%s2 + $0x20] sm:$0xf]
  %v50 = vld [vmem:[%s2 + $0x24] sm:$0xf]
  %v51 = vld [vmem:[%s2 + $0x28] sm:$0xf]
  %v52 = vld [vmem:[%s2 + $0x2c] sm:$0xf]
  %v53 = vld [vmem:[%s2 + $0x30] sm:$0xf]
  %v54 = vld [vmem:[%s2 + $0x34] sm:$0xf]
  %v55 = vld [vmem:[%s2 + $0x38] sm:$0xf]
  %v56 = vld [vmem:[%s2 + $0x3c] sm:$0xf]
  %v57 = vld [vmem:[%s3] sm:$0x1]
  %v59 = vlaneseq
  %v60 = vshrl.u32 %v59, 7
  %v61 = vsub.s32 0, %v60
  %v62 = vrot.slane %v57, %v61
  %v80 = vunpack.c.l.b16 %v41
  %v81 = vunpack.c.l.b16 %v42
  %v82 = vunpack.c.l.b16 %v43
  %v83 = vunpack.c.l.b16 %v44
  %v84 = vunpack.c.l.b16 %v45
  %v85 = vunpack.c.l.b16 %v46
  %v86 = vunpack.c.l.b16 %v47
  %v87 = vunpack.c.l.b16 %v48
  %v88 = vunpack.c.l.b16 %v49
  %v89 = vunpack.c.l.b16 %v50
  %v90 = vunpack.c.l.b16 %v51
  %v91 = vunpack.c.l.b16 %v52
  %v92 = vunpack.c.l.b16 %v53
  %v93 = vunpack.c.l.b16 %v54
  %v94 = vunpack.c.l.b16 %v55
  %v95 = vunpack.c.l.b16 %v56
  %v96 = vpack.c.b16 %v81, %v80
  %v97 = vpack.c.b16 %v83, %v82
  %v98 = vpack.c.b16 %v85, %v84
  %v99 = vpack.c.b16 %v87, %v86
  %v100 = vpack.c.b16 %v89, %v88
  %v101 = vpack.c.b16 %v91, %v90
  %v102 = vpack.c.b16 %v93, %v92
  %v103 = vpack.c.b16 %v95, %v94
  %112 = vmatprep.subr.bf16.mxu0 0
  %113 = vmatpush1.bf16.msra.mxu0 %v103
  %114 = vmatprep.subr.bf16.mxu0 0
  %115 = vmatpush1.bf16.msra.mxu0 %v102
  %116 = vmatprep.subr.bf16.mxu0 0
  %117 = vmatpush1.bf16.msra.mxu0 %v101
  %118 = vmatprep.subr.bf16.mxu0 0
  %119 = vmatpush1.bf16.msra.mxu0 %v100
  %120 = vmatprep.subr.bf16.mxu0 0
  %121 = vmatpush1.bf16.msra.mxu0 %v99
  %122 = vmatprep.subr.bf16.mxu0 0
  %123 = vmatpush1.bf16.msra.mxu0 %v98
  %124 = vmatprep.subr.bf16.mxu0 0
  %125 = vmatpush1.bf16.msra.mxu0 %v97
  %126 = vmatprep.subr.bf16.mxu0 0
  %127 = vmatpush1.bf16.msra.mxu0 %v96
  %128 = vmatprep.subr.bf16.mxu0 0
  %129 = vmatpush2.bf16.msra.mxu0 0
  %130 = vmatprep.subr.bf16.mxu0 0
  %131 = vmatpush2.bf16.msra.mxu0 0
  %132 = vmatprep.subr.bf16.mxu0 0
  %133 = vmatpush2.bf16.msra.mxu0 0
  %134 = vmatprep.subr.bf16.mxu0 0
  %135 = vmatpush2.bf16.msra.mxu0 0
  %136 = vmatprep.subr.bf16.mxu0 0
  %137 = vmatpush2.bf16.msra.mxu0 0
  %138 = vmatprep.subr.bf16.mxu0 0
  %139 = vmatpush2.bf16.msra.mxu0 0
  %140 = vmatprep.subr.bf16.mxu0 0
  %141 = vmatpush2.bf16.msra.mxu0 0
  %142 = vmatprep.subr.bf16.mxu0 0
  %143 = vmatpush2.bf16.msra.mxu0 0
  %144 = vmatprep.mubr.bf16.mxu0 0
  %145 = vmatmul.mubr.bf16.gmra.mxu0 %v40
  %v146 = vpop.f32.mrf.mxu0
  %v147 = vadd.f32 %v62, %v146
  %v148 = vpop.f32.mrf.mxu0
  %v149 = vpop.f32.mrf.mxu0
  %v150 = vpop.f32.mrf.mxu0
  %151 = vdwg.mxu0
  %v152 = vld [vmem:[%s1] sm:$0xff]
  %v153 = vld [vmem:[%s1 + $0x8] sm:$0xff]
  %v154 = vld [vmem:[%s1 + $0x10] sm:$0xff]
  %v155 = vld [vmem:[%s1 + $0x18] sm:$0xff]
  %v156 = vld [vmem:[%s1 + $0x20] sm:$0xff]
  %v157 = vld [vmem:[%s1 + $0x28] sm:$0xff]
  %v158 = vld [vmem:[%s1 + $0x30] sm:$0xff]
  %v159 = vld [vmem:[%s1 + $0x38] sm:$0xff]
  %v160 = vpack.c.bf16 %v153, %v152
  %v161 = vpack.c.bf16 %v155, %v154
  %v162 = vpack.c.bf16 %v157, %v156
  %v163 = vpack.c.bf16 %v159, %v158
  %v164 = vld [vmem:[%s4] sm:$0xff]
  %v165 = vld [vmem:[%s4 + $0x8] sm:$0xff]
  %v166 = vld [vmem:[%s4 + $0x10] sm:$0xff]
  %v167 = vld [vmem:[%s4 + $0x18] sm:$0xff]
  %v168 = vld [vmem:[%s4 + $0x20] sm:$0xff]
  %v169 = vld [vmem:[%s4 + $0x28] sm:$0xff]
  %v170 = vld [vmem:[%s4 + $0x30] sm:$0xff]
  %v171 = vld [vmem:[%s4 + $0x38] sm:$0xff]
  %v172 = vld [vmem:[%s4 + $0x40] sm:$0xff]
  %v173 = vld [vmem:[%s4 + $0x48] sm:$0xff]
  %v174 = vld [vmem:[%s4 + $0x50] sm:$0xff]
  %v175 = vld [vmem:[%s4 + $0x58] sm:$0xff]
  %v176 = vld [vmem:[%s4 + $0x60] sm:$0xff]
  %v177 = vld [vmem:[%s4 + $0x68] sm:$0xff]
  %v178 = vld [vmem:[%s4 + $0x70] sm:$0xff]
  %v179 = vld [vmem:[%s4 + $0x78] sm:$0xff]
  %v180 = vld [vmem:[%s5] sm:$0x3]
  %v182 = vlaneseq
  %v183 = vshrl.u32 %v182, 7
  %v184 = vsub.s32 0, %v183
  %v185 = vrot.slane %v180, %v184
  %v186 = vlaneseq
  %v187 = vshrl.u32 %v186, 7
  %v188 = vsub.s32 1, %v187
  %v189 = vrot.slane %v180, %v188
  %v208 = vunpack.c.l.b16 %v164
  %v209 = vunpack.c.h.b16 %v164
  %v210 = vunpack.c.l.b16 %v165
  %v211 = vunpack.c.h.b16 %v165
  %v212 = vunpack.c.l.b16 %v166
  %v213 = vunpack.c.h.b16 %v166
  %v214 = vunpack.c.l.b16 %v167
  %v215 = vunpack.c.h.b16 %v167
  %v216 = vunpack.c.l.b16 %v168
  %v217 = vunpack.c.h.b16 %v168
  %v218 = vunpack.c.l.b16 %v169
  %v219 = vunpack.c.h.b16 %v169
  %v220 = vunpack.c.l.b16 %v170
  %v221 = vunpack.c.h.b16 %v170
  %v222 = vunpack.c.l.b16 %v171
  %v223 = vunpack.c.h.b16 %v171
  %v224 = vunpack.c.l.b16 %v172
  %v225 = vunpack.c.h.b16 %v172
  %v226 = vunpack.c.l.b16 %v173
  %v227 = vunpack.c.h.b16 %v173
  %v228 = vunpack.c.l.b16 %v174
  %v229 = vunpack.c.h.b16 %v174
  %v230 = vunpack.c.l.b16 %v175
  %v231 = vunpack.c.h.b16 %v175
  %v232 = vunpack.c.l.b16 %v176
  %v233 = vunpack.c.h.b16 %v176
  %v234 = vunpack.c.l.b16 %v177
  %v235 = vunpack.c.h.b16 %v177
  %v236 = vunpack.c.l.b16 %v178
  %v237 = vunpack.c.h.b16 %v178
  %v238 = vunpack.c.l.b16 %v179
  %v239 = vunpack.c.h.b16 %v179
  %v240 = vpack.c.b16 %v210, %v208
  %v241 = vpack.c.b16 %v211, %v209
  %v242 = vpack.c.b16 %v214, %v212
  %v243 = vpack.c.b16 %v215, %v213
  %v244 = vpack.c.b16 %v218, %v216
  %v245 = vpack.c.b16 %v219, %v217
  %v246 = vpack.c.b16 %v222, %v220
  %v247 = vpack.c.b16 %v223, %v221
  %v248 = vpack.c.b16 %v226, %v224
  %v249 = vpack.c.b16 %v227, %v225
  %v250 = vpack.c.b16 %v230, %v228
  %v251 = vpack.c.b16 %v231, %v229
  %v252 = vpack.c.b16 %v234, %v232
  %v253 = vpack.c.b16 %v235, %v233
  %v254 = vpack.c.b16 %v238, %v236
  %v255 = vpack.c.b16 %v239, %v237
  %272 = vmatprep.subr.bf16.mxu0 %v255
  %273 = vmatpush1.bf16.msra.mxu0 %v254
  %274 = vmatprep.subr.bf16.mxu0 %v253
  %275 = vmatpush1.bf16.msra.mxu0 %v252
  %276 = vmatprep.subr.bf16.mxu0 %v251
  %277 = vmatpush1.bf16.msra.mxu0 %v250
  %278 = vmatprep.subr.bf16.mxu0 %v249
  %279 = vmatpush1.bf16.msra.mxu0 %v248
  %280 = vmatprep.subr.bf16.mxu0 %v247
  %281 = vmatpush1.bf16.msra.mxu0 %v246
  %282 = vmatprep.subr.bf16.mxu0 %v245
  %283 = vmatpush1.bf16.msra.mxu0 %v244
  %284 = vmatprep.subr.bf16.mxu0 %v243
  %285 = vmatpush1.bf16.msra.mxu0 %v242
  %286 = vmatprep.subr.bf16.mxu0 %v241
  %287 = vmatpush1.bf16.msra.mxu0 %v240
  %288 = vmatprep.subr.bf16.mxu0 0
  %289 = vmatpush2.bf16.msra.mxu0 0
  %290 = vmatprep.subr.bf16.mxu0 0
  %291 = vmatpush2.bf16.msra.mxu0 0
  %292 = vmatprep.subr.bf16.mxu0 0
  %293 = vmatpush2.bf16.msra.mxu0 0
  %294 = vmatprep.subr.bf16.mxu0 0
  %295 = vmatpush2.bf16.msra.mxu0 0
  %296 = vmatprep.subr.bf16.mxu0 0
  %297 = vmatpush2.bf16.msra.mxu0 0
  %298 = vmatprep.subr.bf16.mxu0 0
  %299 = vmatpush2.bf16.msra.mxu0 0
  %300 = vmatprep.subr.bf16.mxu0 0
  %301 = vmatpush2.bf16.msra.mxu0 0
  %302 = vmatprep.subr.bf16.mxu0 0
  %303 = vmatpush2.bf16.msra.mxu0 0
  %304 = vmatprep.mubr.bf16.mxu0 0
  %305 = vmatmul.mubr.bf16.gmra.mxu0 %v160
  %v306 = vpop.f32.mrf.mxu0
  %v307 = vadd.f32 %v185, %v306
  %v308 = vpop.f32.mrf.mxu0
  %v309 = vadd.f32 %v189, %v308
  %v310 = vpop.f32.mrf.mxu0
  %v311 = vadd.f32 %v185, %v310
  %v312 = vpop.f32.mrf.mxu0
  %v313 = vadd.f32 %v189, %v312
  %314 = vmatprep.mubr.bf16.mxu0 0
  %315 = vmatmul.mubr.bf16.gmra.mxu0 %v161
  %v316 = vpop.f32.mrf.mxu0
  %v317 = vadd.f32 %v185, %v316
  %v318 = vpop.f32.mrf.mxu0
  %v319 = vadd.f32 %v189, %v318
  %v320 = vpop.f32.mrf.mxu0
  %v321 = vadd.f32 %v185, %v320
  %v322 = vpop.f32.mrf.mxu0
  %v323 = vadd.f32 %v189, %v322
  %324 = vmatprep.mubr.bf16.mxu0 0
  %325 = vmatmul.mubr.bf16.gmra.mxu0 %v162
  %v326 = vpop.f32.mrf.mxu0
  %v327 = vadd.f32 %v185, %v326
  %v328 = vpop.f32.mrf.mxu0
  %v329 = vadd.f32 %v189, %v328
  %v330 = vpop.f32.mrf.mxu0
  %v331 = vadd.f32 %v185, %v330
  %v332 = vpop.f32.mrf.mxu0
  %v333 = vadd.f32 %v189, %v332
  %334 = vmatprep.mubr.bf16.mxu0 0
  %335 = vmatmul.mubr.bf16.gmra.mxu0 %v163
  %v336 = vpop.f32.mrf.mxu0
  %v337 = vadd.f32 %v185, %v336
  %v338 = vpop.f32.mrf.mxu0
  %v339 = vadd.f32 %v189, %v338
  %v340 = vpop.f32.mrf.mxu0
  %v341 = vadd.f32 %v185, %v340
  %v342 = vpop.f32.mrf.mxu0
  %v343 = vadd.f32 %v189, %v342
  %344 = vdwg.mxu0
  %v346 = vcombine.high %v147, %v147
  %v348 = vunpack.c.l.s4 1966171168
  %v349 = vunpack.c.0.s8 %v348
  %v350 = vlaneseq
  %v351 = vshrl.u32 %v350, 7
  %v352 = vsub.s32 %v349, %v351
  %v353 = vrot.slane %v147, %v352
  %v355 = vunpack.c.l.s4 1966171168
  %v356 = vunpack.c.0.s8 %v355
  %v357 = vlaneseq
  %v358 = vshrl.u32 %v357, 7
  %v359 = vsub.s32 %v356, %v358
  %v360 = vrot.slane %v346, %v359
  %v361 = vcombine.high %v353, %v353
  %v362 = vcombine.high %v360, %v360
  %v364 = vunpack.c.l.s4 1966171168
  %v365 = vunpack.c.0.s8 %v364
  %v366 = vlaneseq
  %v367 = vshrl.u32 %v366, 7
  %v368 = vsub.s32 %v365, %v367
  %v369 = vrot.slane %v353, %v368
  %v371 = vunpack.c.l.s4 1966171168
  %v372 = vunpack.c.0.s8 %v371
  %v373 = vlaneseq
  %v374 = vshrl.u32 %v373, 7
  %v375 = vsub.s32 %v372, %v374
  %v376 = vrot.slane %v360, %v375
  %v378 = vunpack.c.l.s4 1966171168
  %v379 = vunpack.c.0.s8 %v378
  %v380 = vlaneseq
  %v381 = vshrl.u32 %v380, 7
  %v382 = vsub.s32 %v379, %v381
  %v383 = vrot.slane %v361, %v382
  %v385 = vunpack.c.l.s4 1966171168
  %v386 = vunpack.c.0.s8 %v385
  %v387 = vlaneseq
  %v388 = vshrl.u32 %v387, 7
  %v389 = vsub.s32 %v386, %v388
  %v390 = vrot.slane %v362, %v389
  %v391 = vcombine.high %v369, %v369
  %v392 = vcombine.high %v376, %v376
  %v393 = vcombine.high %v383, %v383
  %v394 = vcombine.high %v390, %v390
  %v395 = vlaneseq
  %v396 = vshrl.u32 %v395, 7
  %v397 = vsub.s32 0, %v396
  %v398 = vrot.slane %v369, %v397
  %v399 = vlaneseq
  %v400 = vshrl.u32 %v399, 7
  %v401 = vsub.s32 0, %v400
  %v402 = vrot.slane %v383, %v401
  %v403 = vlaneseq
  %v404 = vshrl.u32 %v403, 7
  %v405 = vsub.s32 0, %v404
  %v406 = vrot.slane %v391, %v405
  %v407 = vlaneseq
  %v408 = vshrl.u32 %v407, 7
  %v409 = vsub.s32 0, %v408
  %v410 = vrot.slane %v393, %v409
  %v411 = vlaneseq
  %v412 = vshrl.u32 %v411, 7
  %v413 = vsub.s32 0, %v412
  %v414 = vrot.slane %v376, %v413
  %v415 = vlaneseq
  %v416 = vshrl.u32 %v415, 7
  %v417 = vsub.s32 0, %v416
  %v418 = vrot.slane %v390, %v417
  %v419 = vlaneseq
  %v420 = vshrl.u32 %v419, 7
  %v421 = vsub.s32 0, %v420
  %v422 = vrot.slane %v392, %v421
  %v423 = vlaneseq
  %v424 = vshrl.u32 %v423, 7
  %v425 = vsub.s32 0, %v424
  %v426 = vrot.slane %v394, %v425
  %v435 = vmul.f32 %v307, %v398
  %v436 = vmul.f32 %v311, %v402
  %v437 = vmul.f32 %v317, %v406
  %v438 = vmul.f32 %v321, %v410
  %v439 = vmul.f32 %v327, %v414
  %v440 = vmul.f32 %v331, %v418
  %v441 = vmul.f32 %v337, %v422
  %v442 = vmul.f32 %v341, %v426
  %v443 = vpack.c.bf16 %v436, %v435
  %v444 = vpack.c.bf16 %v438, %v437
  %v445 = vpack.c.bf16 %v440, %v439
  %v446 = vpack.c.bf16 %v442, %v441
  %v447 = vld [vmem:[%s8] sm:$0xf]
  %v448 = vld [vmem:[%s8 + $0x4] sm:$0xf]
  %v449 = vld [vmem:[%s8 + $0x8] sm:$0xf]
  %v450 = vld [vmem:[%s8 + $0xc] sm:$0xf]
  %v451 = vld [vmem:[%s8 + $0x10] sm:$0xf]
  %v452 = vld [vmem:[%s8 + $0x14] sm:$0xf]
  %v453 = vld [vmem:[%s8 + $0x18] sm:$0xf]
  %v454 = vld [vmem:[%s8 + $0x1c] sm:$0xf]
  %v455 = vld [vmem:[%s8 + $0x20] sm:$0xf]
  %v456 = vld [vmem:[%s8 + $0x24] sm:$0xf]
  %v457 = vld [vmem:[%s8 + $0x28] sm:$0xf]
  %v458 = vld [vmem:[%s8 + $0x2c] sm:$0xf]
  %v459 = vld [vmem:[%s8 + $0x30] sm:$0xf]
  %v460 = vld [vmem:[%s8 + $0x34] sm:$0xf]
  %v461 = vld [vmem:[%s8 + $0x38] sm:$0xf]
  %v462 = vld [vmem:[%s8 + $0x3c] sm:$0xf]
  %v479 = vunpack.c.l.b16 %v447
  %v480 = vunpack.c.l.b16 %v448
  %v481 = vunpack.c.l.b16 %v449
  %v482 = vunpack.c.l.b16 %v450
  %v483 = vunpack.c.l.b16 %v451
  %v484 = vunpack.c.l.b16 %v452
  %v485 = vunpack.c.l.b16 %v453
  %v486 = vunpack.c.l.b16 %v454
  %v487 = vunpack.c.l.b16 %v455
  %v488 = vunpack.c.l.b16 %v456
  %v489 = vunpack.c.l.b16 %v457
  %v490 = vunpack.c.l.b16 %v458
  %v491 = vunpack.c.l.b16 %v459
  %v492 = vunpack.c.l.b16 %v460
  %v493 = vunpack.c.l.b16 %v461
  %v494 = vunpack.c.l.b16 %v462
  %v495 = vpack.c.b16 %v480, %v479
  %v496 = vpack.c.b16 %v482, %v481
  %v497 = vpack.c.b16 %v484, %v483
  %v498 = vpack.c.b16 %v486, %v485
  %v499 = vpack.c.b16 %v488, %v487
  %v500 = vpack.c.b16 %v490, %v489
  %v501 = vpack.c.b16 %v492, %v491
  %v502 = vpack.c.b16 %v494, %v493
  %511 = vmatprep.subr.bf16.mxu0 0
  %512 = vmatpush1.bf16.msra.mxu0 %v502
  %513 = vmatprep.subr.bf16.mxu0 0
  %514 = vmatpush1.bf16.msra.mxu0 %v501
  %515 = vmatprep.subr.bf16.mxu0 0
  %516 = vmatpush1.bf16.msra.mxu0 %v500
  %517 = vmatprep.subr.bf16.mxu0 0
  %518 = vmatpush1.bf16.msra.mxu0 %v499
  %519 = vmatprep.subr.bf16.mxu0 0
  %520 = vmatpush1.bf16.msra.mxu0 %v498
  %521 = vmatprep.subr.bf16.mxu0 0
  %522 = vmatpush1.bf16.msra.mxu0 %v497
  %523 = vmatprep.subr.bf16.mxu0 0
  %524 = vmatpush1.bf16.msra.mxu0 %v496
  %525 = vmatprep.subr.bf16.mxu0 0
  %526 = vmatpush1.bf16.msra.mxu0 %v495
  %527 = vmatprep.subr.bf16.mxu0 0
  %528 = vmatpush2.bf16.msra.mxu0 0
  %529 = vmatprep.subr.bf16.mxu0 0
  %530 = vmatpush2.bf16.msra.mxu0 0
  %531 = vmatprep.subr.bf16.mxu0 0
  %532 = vmatpush2.bf16.msra.mxu0 0
  %533 = vmatprep.subr.bf16.mxu0 0
  %534 = vmatpush2.bf16.msra.mxu0 0
  %535 = vmatprep.subr.bf16.mxu0 0
  %536 = vmatpush2.bf16.msra.mxu0 0
  %537 = vmatprep.subr.bf16.mxu0 0
  %538 = vmatpush2.bf16.msra.mxu0 0
  %539 = vmatprep.subr.bf16.mxu0 0
  %540 = vmatpush2.bf16.msra.mxu0 0
  %541 = vmatprep.subr.bf16.mxu0 0
  %542 = vmatpush2.bf16.msra.mxu0 0
  %543 = vmatprep.mubr.bf16.mxu0 0
  %544 = vmatmul.mubr.bf16.gmra.mxu0 %v443
  %v545 = vpop.f32.mrf.mxu0
  %v546 = vadd.f32 0.0, %v545
  %v547 = vpop.f32.mrf.mxu0
  %v548 = vpop.f32.mrf.mxu0
  %v549 = vadd.f32 0.0, %v548
  %v550 = vpop.f32.mrf.mxu0
  %551 = vmatprep.mubr.bf16.mxu0 0
  %552 = vmatmul.mubr.bf16.gmra.mxu0 %v444
  %v553 = vpop.f32.mrf.mxu0
  %v554 = vadd.f32 0.0, %v553
  %v555 = vpop.f32.mrf.mxu0
  %v556 = vpop.f32.mrf.mxu0
  %v557 = vadd.f32 0.0, %v556
  %v558 = vpop.f32.mrf.mxu0
  %559 = vmatprep.mubr.bf16.mxu0 0
  %560 = vmatmul.mubr.bf16.gmra.mxu0 %v445
  %v561 = vpop.f32.mrf.mxu0
  %v562 = vadd.f32 0.0, %v561
  %v563 = vpop.f32.mrf.mxu0
  %v564 = vpop.f32.mrf.mxu0
  %v565 = vadd.f32 0.0, %v564
  %v566 = vpop.f32.mrf.mxu0
  %567 = vmatprep.mubr.bf16.mxu0 0
  %568 = vmatmul.mubr.bf16.gmra.mxu0 %v446
  %v569 = vpop.f32.mrf.mxu0
  %v570 = vadd.f32 0.0, %v569
  %v571 = vpop.f32.mrf.mxu0
  %v572 = vpop.f32.mrf.mxu0
  %v573 = vadd.f32 0.0, %v572
  %v574 = vpop.f32.mrf.mxu0
  %575 = vdwg.mxu0
  %v576 = vmul.f32 %v546, 0.25
  %v577 = vmul.f32 %v549, 0.25
  %v578 = vmul.f32 %v554, 0.25
  %v579 = vmul.f32 %v557, 0.25
  %v580 = vmul.f32 %v562, 0.25
  %v581 = vmul.f32 %v565, 0.25
  %v582 = vmul.f32 %v570, 0.25
  %v583 = vmul.f32 %v573, 0.25
  %v584 = vlaneseq
  %v585 = vshrl.u32 %v584, 7
  %vm586 = vcmp.ge.s32.totalorder %v585, 7
  %v587 = vsel %vm586, 1, 0
  %vm588 = vcmp.eq.s32.totalorder %v587, 1
  %v589 = vsel %vm588, -1e+09, %v576
  %v590 = vsel %vm588, -1e+09, %v577
  %v591 = vsel %vm588, -1e+09, %v578
  %v592 = vsel %vm588, -1e+09, %v579
  %v593 = vsel %vm588, -1e+09, %v580
  %v594 = vsel %vm588, -1e+09, %v581
  %v595 = vsel %vm588, -1e+09, %v582
  %v596 = vsel %vm588, -1e+09, %v583
  %v597 = vrot.slane %v589, 4
  %v598 = vmax.f32 %v589, %v597
  %v599 = vrot.slane %v598, 2
  %v600 = vmax.f32 %v598, %v599
  %v601 = vrot.slane %v600, 1
  %v602 = vmax.f32 %v600, %v601
  %v603 = vrot.slane %v590, 4
  %v604 = vmax.f32 %v590, %v603
  %v605 = vrot.slane %v604, 2
  %v606 = vmax.f32 %v604, %v605
  %v607 = vrot.slane %v606, 1
  %v608 = vmax.f32 %v606, %v607
  %v609 = vrot.slane %v591, 4
  %v610 = vmax.f32 %v591, %v609
  %v611 = vrot.slane %v610, 2
  %v612 = vmax.f32 %v610, %v611
  %v613 = vrot.slane %v612, 1
  %v614 = vmax.f32 %v612, %v613
  %v615 = vrot.slane %v592, 4
  %v616 = vmax.f32 %v592, %v615
  %v617 = vrot.slane %v616, 2
  %v618 = vmax.f32 %v616, %v617
  %v619 = vrot.slane %v618, 1
  %v620 = vmax.f32 %v618, %v619
  %v621 = vrot.slane %v593, 4
  %v622 = vmax.f32 %v593, %v621
  %v623 = vrot.slane %v622, 2
  %v624 = vmax.f32 %v622, %v623
  %v625 = vrot.slane %v624, 1
  %v626 = vmax.f32 %v624, %v625
  %v627 = vrot.slane %v594, 4
  %v628 = vmax.f32 %v594, %v627
  %v629 = vrot.slane %v628, 2
  %v630 = vmax.f32 %v628, %v629
  %v631 = vrot.slane %v630, 1
  %v632 = vmax.f32 %v630, %v631
  %v633 = vrot.slane %v595, 4
  %v634 = vmax.f32 %v595, %v633
  %v635 = vrot.slane %v634, 2
  %v636 = vmax.f32 %v634, %v635
  %v637 = vrot.slane %v636, 1
  %v638 = vmax.f32 %v636, %v637
  %v639 = vrot.slane %v596, 4
  %v640 = vmax.f32 %v596, %v639
  %v641 = vrot.slane %v640, 2
  %v642 = vmax.f32 %v640, %v641
  %v643 = vrot.slane %v642, 1
  %v644 = vmax.f32 %v642, %v643
  %v645 = vsub.f32 %v589, %v602
  %v646 = vsub.f32 %v590, %v608
  %v647 = vsub.f32 %v591, %v614
  %v648 = vsub.f32 %v592, %v620
  %v649 = vsub.f32 %v593, %v626
  %v650 = vsub.f32 %v594, %v632
  %v651 = vsub.f32 %v595, %v638
  %v652 = vsub.f32 %v596, %v644
  %v653 = vmul.f32 %v645, 1.442695
  %v654 = vpow.pop %v653
  %v655 = vmul.f32 %v646, 1.442695
  %v656 = vpow.pop %v655
  %v657 = vmul.f32 %v647, 1.442695
  %v658 = vpow.pop %v657
  %v659 = vmul.f32 %v648, 1.442695
  %v660 = vpow.pop %v659
  %v661 = vmul.f32 %v649, 1.442695
  %v662 = vpow.pop %v661
  %v663 = vmul.f32 %v650, 1.442695
  %v664 = vpow.pop %v663
  %v665 = vmul.f32 %v651, 1.442695
  %v666 = vpow.pop %v665
  %v667 = vmul.f32 %v652, 1.442695
  %v668 = vpow.pop %v667
  %v669 = vrot.slane %v654, 4
  %v670 = vadd.f32 %v654, %v669
  %v671 = vrot.slane %v670, 2
  %v672 = vadd.f32 %v670, %v671
  %v673 = vrot.slane %v672, 1
  %v674 = vadd.f32 %v672, %v673
  %v675 = vrot.slane %v656, 4
  %v676 = vadd.f32 %v656, %v675
  %v677 = vrot.slane %v676, 2
  %v678 = vadd.f32 %v676, %v677
  %v679 = vrot.slane %v678, 1
  %v680 = vadd.f32 %v678, %v679
  %v681 = vrot.slane %v658, 4
  %v682 = vadd.f32 %v658, %v681
  %v683 = vrot.slane %v682, 2
  %v684 = vadd.f32 %v682, %v683
  %v685 = vrot.slane %v684, 1
  %v686 = vadd.f32 %v684, %v685
  %v687 = vrot.slane %v660, 4
  %v688 = vadd.f32 %v660, %v687
  %v689 = vrot.slane %v688, 2
  %v690 = vadd.f32 %v688, %v689
  %v691 = vrot.slane %v690, 1
  %v692 = vadd.f32 %v690, %v691
  %v693 = vrot.slane %v662, 4
  %v694 = vadd.f32 %v662, %v693
  %v695 = vrot.slane %v694, 2
  %v696 = vadd.f32 %v694, %v695
  %v697 = vrot.slane %v696, 1
  %v698 = vadd.f32 %v696, %v697
  %v699 = vrot.slane %v664, 4
  %v700 = vadd.f32 %v664, %v699
  %v701 = vrot.slane %v700, 2
  %v702 = vadd.f32 %v700, %v701
  %v703 = vrot.slane %v702, 1
  %v704 = vadd.f32 %v702, %v703
  %v705 = vrot.slane %v666, 4
  %v706 = vadd.f32 %v666, %v705
  %v707 = vrot.slane %v706, 2
  %v708 = vadd.f32 %v706, %v707
  %v709 = vrot.slane %v708, 1
  %v710 = vadd.f32 %v708, %v709
  %v711 = vrot.slane %v668, 4
  %v712 = vadd.f32 %v668, %v711
  %v713 = vrot.slane %v712, 2
  %v714 = vadd.f32 %v712, %v713
  %v715 = vrot.slane %v714, 1
  %v716 = vadd.f32 %v714, %v715
  %v717 = vrcp.pop %v674
  %v718 = vrcp.pop %v680
  %v719 = vrcp.pop %v686
  %v720 = vrcp.pop %v692
  %v721 = vrcp.pop %v698
  %v722 = vrcp.pop %v704
  %v723 = vrcp.pop %v710
  %v724 = vrcp.pop %v716
  %v725 = vmul.f32 %v654, %v717
  %v726 = vmul.f32 %v656, %v718
  %v727 = vmul.f32 %v658, %v719
  %v728 = vmul.f32 %v660, %v720
  %v729 = vmul.f32 %v662, %v721
  %v730 = vmul.f32 %v664, %v722
  %v731 = vmul.f32 %v666, %v723
  %v732 = vmul.f32 %v668, %v724
  %v733 = vmul.f32 %v725, %v309
  %v734 = vmul.f32 %v726, %v313
  %v735 = vmul.f32 %v727, %v319
  %v736 = vmul.f32 %v728, %v323
  %v737 = vmul.f32 %v729, %v329
  %v738 = vmul.f32 %v730, %v333
  %v739 = vmul.f32 %v731, %v339
  %v740 = vmul.f32 %v732, %v343
  %v741 = vrot.slane %v733, 4
  %v742 = vadd.f32 %v733, %v741
  %v743 = vrot.slane %v742, 2
  %v744 = vadd.f32 %v742, %v743
  %v745 = vrot.slane %v744, 1
  %v746 = vadd.f32 %v744, %v745
  %v747 = vrot.slane %v734, 4
  %v748 = vadd.f32 %v734, %v747
  %v749 = vrot.slane %v748, 2
  %v750 = vadd.f32 %v748, %v749
  %v751 = vrot.slane %v750, 1
  %v752 = vadd.f32 %v750, %v751
  %v753 = vrot.slane %v735, 4
  %v754 = vadd.f32 %v735, %v753
  %v755 = vrot.slane %v754, 2
  %v756 = vadd.f32 %v754, %v755
  %v757 = vrot.slane %v756, 1
  %v758 = vadd.f32 %v756, %v757
  %v759 = vrot.slane %v736, 4
  %v760 = vadd.f32 %v736, %v759
  %v761 = vrot.slane %v760, 2
  %v762 = vadd.f32 %v760, %v761
  %v763 = vrot.slane %v762, 1
  %v764 = vadd.f32 %v762, %v763
  %v765 = vrot.slane %v737, 4
  %v766 = vadd.f32 %v737, %v765
  %v767 = vrot.slane %v766, 2
  %v768 = vadd.f32 %v766, %v767
  %v769 = vrot.slane %v768, 1
  %v770 = vadd.f32 %v768, %v769
  %v771 = vrot.slane %v738, 4
  %v772 = vadd.f32 %v738, %v771
  %v773 = vrot.slane %v772, 2
  %v774 = vadd.f32 %v772, %v773
  %v775 = vrot.slane %v774, 1
  %v776 = vadd.f32 %v774, %v775
  %v777 = vrot.slane %v739, 4
  %v778 = vadd.f32 %v739, %v777
  %v779 = vrot.slane %v778, 2
  %v780 = vadd.f32 %v778, %v779
  %v781 = vrot.slane %v780, 1
  %v782 = vadd.f32 %v780, %v781
  %v783 = vrot.slane %v740, 4
  %v784 = vadd.f32 %v740, %v783
  %v785 = vrot.slane %v784, 2
  %v786 = vadd.f32 %v784, %v785
  %v787 = vrot.slane %v786, 1
  %v788 = vadd.f32 %v786, %v787
  %v789 = vpack.c.bf16 %v746, %v746
  %v790 = vpack.c.bf16 %v752, %v752
  %v791 = vpack.c.bf16 %v758, %v758
  %v792 = vpack.c.bf16 %v764, %v764
  %v793 = vpack.c.bf16 %v770, %v770
  %v794 = vpack.c.bf16 %v776, %v776
  %v795 = vpack.c.bf16 %v782, %v782
  %v796 = vpack.c.bf16 %v788, %v788
  %v797 = vld [vmem:[%s6] sm:$0xf]
  %v798 = vld [vmem:[%s6 + $0x4] sm:$0xf]
  %v799 = vld [vmem:[%s6 + $0x8] sm:$0xf]
  %v800 = vld [vmem:[%s6 + $0xc] sm:$0xf]
  %v801 = vld [vmem:[%s6 + $0x10] sm:$0xf]
  %v802 = vld [vmem:[%s6 + $0x14] sm:$0xf]
  %v803 = vld [vmem:[%s6 + $0x18] sm:$0xf]
  %v804 = vld [vmem:[%s6 + $0x1c] sm:$0xf]
  %v805 = vld [vmem:[%s6 + $0x20] sm:$0xf]
  %v806 = vld [vmem:[%s6 + $0x24] sm:$0xf]
  %v807 = vld [vmem:[%s6 + $0x28] sm:$0xf]
  %v808 = vld [vmem:[%s6 + $0x2c] sm:$0xf]
  %v809 = vld [vmem:[%s6 + $0x30] sm:$0xf]
  %v810 = vld [vmem:[%s6 + $0x34] sm:$0xf]
  %v811 = vld [vmem:[%s6 + $0x38] sm:$0xf]
  %v812 = vld [vmem:[%s6 + $0x3c] sm:$0xf]
  %v813 = vld [vmem:[%s7] sm:$0x1]
  %v815 = vlaneseq
  %v816 = vshrl.u32 %v815, 7
  %v817 = vsub.s32 0, %v816
  %v818 = vrot.slane %v813, %v817
  %v828 = vunpack.c.l.b16 %v789
  %v829 = vunpack.c.l.b16 %v790
  %v830 = vunpack.c.l.b16 %v791
  %v831 = vunpack.c.l.b16 %v792
  %v832 = vunpack.c.l.b16 %v793
  %v833 = vunpack.c.l.b16 %v794
  %v834 = vunpack.c.l.b16 %v795
  %v835 = vunpack.c.l.b16 %v796
  %vm836 = vcmask 1041409
  %v837 = vsel %vm836, %v829, %v828
  %vm838 = vcmask 1042434
  %v839 = vsel %vm838, %v830, %v837
  %vm840 = vcmask 1043459
  %v841 = vsel %vm840, %v831, %v839
  %vm842 = vcmask 1044484
  %v843 = vsel %vm842, %v832, %v841
  %vm844 = vcmask 1045509
  %v845 = vsel %vm844, %v833, %v843
  %vm846 = vcmask 1046534
  %v847 = vsel %vm846, %v834, %v845
  %vm848 = vcmask 1047559
  %v849 = vsel %vm848, %v835, %v847
  %v850 = vpack.c.b16 %v849, %v849
  %v868 = vunpack.c.l.b16 %v797
  %v869 = vunpack.c.l.b16 %v798
  %v870 = vunpack.c.l.b16 %v799
  %v871 = vunpack.c.l.b16 %v800
  %v872 = vunpack.c.l.b16 %v801
  %v873 = vunpack.c.l.b16 %v802
  %v874 = vunpack.c.l.b16 %v803
  %v875 = vunpack.c.l.b16 %v804
  %v876 = vunpack.c.l.b16 %v805
  %v877 = vunpack.c.l.b16 %v806
  %v878 = vunpack.c.l.b16 %v807
  %v879 = vunpack.c.l.b16 %v808
  %v880 = vunpack.c.l.b16 %v809
  %v881 = vunpack.c.l.b16 %v810
  %v882 = vunpack.c.l.b16 %v811
  %v883 = vunpack.c.l.b16 %v812
  %v884 = vpack.c.b16 %v869, %v868
  %v885 = vpack.c.b16 %v871, %v870
  %v886 = vpack.c.b16 %v873, %v872
  %v887 = vpack.c.b16 %v875, %v874
  %v888 = vpack.c.b16 %v877, %v876
  %v889 = vpack.c.b16 %v879, %v878
  %v890 = vpack.c.b16 %v881, %v880
  %v891 = vpack.c.b16 %v883, %v882
  %900 = vmatprep.subr.bf16.mxu0 0
  %901 = vmatpush1.bf16.msra.mxu0 %v891
  %902 = vmatprep.subr.bf16.mxu0 0
  %903 = vmatpush1.bf16.msra.mxu0 %v890
  %904 = vmatprep.subr.bf16.mxu0 0
  %905 = vmatpush1.bf16.msra.mxu0 %v889
  %906 = vmatprep.subr.bf16.mxu0 0
  %907 = vmatpush1.bf16.msra.mxu0 %v888
  %908 = vmatprep.subr.bf16.mxu0 0
  %909 = vmatpush1.bf16.msra.mxu0 %v887
  %910 = vmatprep.subr.bf16.mxu0 0
  %911 = vmatpush1.bf16.msra.mxu0 %v886
  %912 = vmatprep.subr.bf16.mxu0 0
  %913 = vmatpush1.bf16.msra.mxu0 %v885
  %914 = vmatprep.subr.bf16.mxu0 0
  %915 = vmatpush1.bf16.msra.mxu0 %v884
  %916 = vmatprep.subr.bf16.mxu0 0
  %917 = vmatpush2.bf16.msra.mxu0 0
  %918 = vmatprep.subr.bf16.mxu0 0
  %919 = vmatpush2.bf16.msra.mxu0 0
  %920 = vmatprep.subr.bf16.mxu0 0
  %921 = vmatpush2.bf16.msra.mxu0 0
  %922 = vmatprep.subr.bf16.mxu0 0
  %923 = vmatpush2.bf16.msra.mxu0 0
  %924 = vmatprep.subr.bf16.mxu0 0
  %925 = vmatpush2.bf16.msra.mxu0 0
  %926 = vmatprep.subr.bf16.mxu0 0
  %927 = vmatpush2.bf16.msra.mxu0 0
  %928 = vmatprep.subr.bf16.mxu0 0
  %929 = vmatpush2.bf16.msra.mxu0 0
  %930 = vmatprep.subr.bf16.mxu0 0
  %931 = vmatpush2.bf16.msra.mxu0 0
  %932 = vmatprep.mubr.bf16.mxu0 0
  %933 = vmatmul.mubr.bf16.gmra.mxu0 %v850
  %v934 = vpop.f32.mrf.mxu0
  %v935 = vadd.f32 %v818, %v934
  %v936 = vpop.f32.mrf.mxu0
  %v937 = vpop.f32.mrf.mxu0
  %v938 = vpop.f32.mrf.mxu0
  %939 = vdwg.mxu0
  %v940 = vmax.f32 %v935, 0.0
  %v941 = vld [vmem:[%s9] sm:$0x1]
  %v942 = vld [vmem:[%s10] sm:$0x1]
  %943 = vadd.xlane.f32.xlu0 %v940
  %v944 = vpop.xlane.xlu0 %943
  %v945 = vrcp.pop 128.0
  %v946 = vmul.f32 %v944, %v945
  %v947 = vsub.f32 %v940, %v946
  %v948 = vmul.f32 %v947, %v947
  %949 = vadd.xlane.f32.xlu0 %v948
  %v950 = vpop.xlane.xlu0 %949
  %v951 = vrcp.pop 127.0
  %v952 = vmul.f32 %v950, %v951
  %v953 = vrsqrt.pop %v952
  %v954 = vmul.f32 %v952, %v953
  %vm955 = vcmp.eq.f32.partialorder %v952, inf
  %v956 = vsel %vm955, %v952, %v954
  %vm957 = vcmp.eq.f32.partialorder %v952, 0.0
  %v958 = vand.u32 %v952, 2147483648
  %v959 = vsel %vm957, %v958, %v956
  %v961 = vlaneseq
  %v962 = vshrl.u32 %v961, 7
  %v963 = vsub.s32 0, %v962
  %v964 = vrot.slane %v941, %v963
  %v966 = vmul.f32 %v964, %v947
  %v967 = vadd.f32 %v959, 1e-06
  %v968 = vrcp.pop %v967
  %v969 = vmul.f32 %v966, %v968
  %v971 = vlaneseq
  %v972 = vshrl.u32 %v971, 7
  %v973 = vsub.s32 0, %v972
  %v974 = vrot.slane %v942, %v973
  %v976 = vadd.f32 %v969, %v974
  %977 = vst [vmem:[%s11] sm:$0xff] %v976
  // Predicated region
  $region46: #{graph_transformer_forward.11} parent=0 // pred_check
    _
  $region47: #{graph_transformer_forward.11} parent=0 // pred_check_branch
    %979 = sbr.rel (0) target = $region49
  $region48: #{graph_transformer_forward.11} parent=0 // pred_region
    _
  $region49: #{graph_transformer_forward.11} parent=0 // pred_fallthru
    _
  // Predicated region
  $region50: #{graph_transformer_forward.11} parent=0 // pred_check
    _
  $region51: #{graph_transformer_forward.11} parent=0 // pred_check_branch
    %981 = sbr.rel (0) target = $region53
  $region52: #{graph_transformer_forward.11} parent=0 // pred_region
    _
  $region53: #{graph_transformer_forward.11} parent=0 // pred_fallthru
    _

</llo_original>
